<compile_context>
chip_gen: v5e
topology: v5e:2x2
jax: 0.10.0
libtpu: 0.0.40
codegen_flags: <defaults>
</compile_context>

<pallas_src>
from functools import partial

import jax
import jax.numpy as jnp
from jax.experimental import pallas as pl
from jax.experimental.pallas import tpu as pltpu


def _round_up(x, m):
    return ((x + m - 1) // m) * m


# ----------------------------- kernels ------------------------------------ #

def _act(pre_f32, tanh_dtype, out_dtype):
    """tanh on an f32 pre-activation; tanh_dtype=bf16 on v6e/v7x (bf16 EUP)."""
    return jnp.tanh(pre_f32.astype(tanh_dtype)).astype(out_dtype)


def _block_kernel(x_ref, w1, b1, w2, b2, w3, b3, wo, bo, o_ref, *, tanh_dtype):
    # ControlNet(use_mas=False):  output_layer(Block(x))
    cd = w1.dtype
    x = x_ref[...].astype(cd)                                  # cast in-kernel
    h = _act(jnp.dot(x, w1[...], preferred_element_type=jnp.float32) + b1[...],
             tanh_dtype, cd)
    h = _act(jnp.dot(h, w2[...], preferred_element_type=jnp.float32) + b2[...],
             tanh_dtype, cd)
    y = jnp.dot(h, w3[...], preferred_element_type=jnp.float32) + b3[...]
    o_ref[...] = (jnp.dot(y.astype(cd), wo[...],
                          preferred_element_type=jnp.float32)
                  + bo[...]).astype(o_ref.dtype)


def _control_kernel(xe_ref, z1w, z1b, w1, b1, w2, b2, w3, b3,
                    z2wy, z2we, z2b, wo, bo, o_ref, *, din, tanh_dtype):
    # ControlNet(use_mas=True):  output_layer(ControlBlock(x, extra))
    # xe = concat([x, extra], axis=1)  (built once in the wrapper)
    cd = w1.dtype
    xe_f32 = xe_ref[...].astype(jnp.float32)                   # (T, Din+E)
    xe_c = xe_f32.astype(cd)
    T = xe_c.shape[0]

    # delta_x = zero_layer1(cat([x, extra], 1)); z1w output is zero-padded to
    # Din+E columns so it shares the padded-W1 layout below.
    dx_pad = (jnp.dot(xe_c, z1w[...], preferred_element_type=jnp.float32)
              + z1b[...])                                      # (T, Din+E)

    # Row-stack the two Block evaluations: [x + delta_x ; x].  The `extra`
    # columns hit the E zero rows of the padded W1, contributing nothing, so
    # W1/W2/W3 each run as a single 2T-row matmul (half the MXU drains).
    stack = jnp.concatenate([xe_f32 + dx_pad, xe_f32], axis=0).astype(cd)

    h = _act(jnp.dot(stack, w1[...], preferred_element_type=jnp.float32)
             + b1[...], tanh_dtype, cd)
    h = _act(jnp.dot(h, w2[...], preferred_element_type=jnp.float32)
             + b2[...], tanh_dtype, cd)
    h = jnp.dot(h, w3[...], preferred_element_type=jnp.float32) + b3[...]  # (2T,H)

    y_ = h[:T]       # trainable_block(x + delta_x)
    tb_x = h[T:]     # trainable_block(x)

    # delta_y = zero_layer2(cat([y_, extra], 1))   (split-matmul form)
    e_c = xe_c[:, din:]
    dy = (jnp.dot(y_.astype(cd), z2wy[...], preferred_element_type=jnp.float32)
          + jnp.dot(e_c, z2we[...], preferred_element_type=jnp.float32)
          + z2b[...])

    net = tb_x + dy
    o_ref[...] = (jnp.dot(net.astype(cd), wo[...],
                          preferred_element_type=jnp.float32)
                  + bo[...]).astype(o_ref.dtype)


# ----------------------------- wrappers ------------------------------------ #

def _default_tanh_dtype(cd):
    # bf16 tanh only where the EUP/VPU are bf16-native (v6e / v7x).
    if cd != jnp.dtype(jnp.bfloat16):
        return jnp.float32
    try:
        kind = jax.devices()[0].device_kind.lower()
    except Exception:
        kind = ""
    if any(v in kind for v in ("v2", "v3", "v4", "v5")):
        return jnp.float32
    return jnp.bfloat16


def _pick_batch_tile(B, align):
    # MXU-aligned row tiles:
    #  * tiny batches: one tile covering the (aligned) batch
    #  * mid batches: >= 2 grid steps so "parallel" can shard across v7x's two
    #    TensorCores, with minimal row padding
    #  * large batches: 512-row tiles (multiple of 256 for v6e/v7x MXU M dim,
    #    multiple of 128 for v5e), capped at 512 for v7x's 64 MiB VMEM
    if B <= 64:
        return _round_up(max(B, align), align)
    if B > 1024:
        return 512
    return min(512, _round_up(pl.cdiv(B, 2), align))


def controlnet_forward(params, x, extra=None, *, use_mas=False,
                       compute_dtype=jnp.bfloat16, batch_tile=None,
                       tanh_dtype=None, vmem_limit_bytes=48 * 1024 * 1024):
    B, Din = x.shape
    Dout = params["wo"].shape[1]
    Dout_pad = _round_up(Dout, 128)           # lane-dense output columns
    out_dtype = x.dtype
    cd = jnp.dtype(compute_dtype)
    align = 16 if cd.itemsize < 4 else 8      # full packed sublane groups

    if tanh_dtype is None:
        tanh_dtype = _default_tanh_dtype(cd)

    if batch_tile is not None:
        tile = _round_up(max(int(batch_tile), align), align)   # guarded user tile
    else:
        tile = _pick_batch_tile(B, align)
    B_pad = _round_up(B, tile)
    grid = (B_pad // tile,)

    cparams = pltpu.CompilerParams(dimension_semantics=("parallel",),
                                   vmem_limit_bytes=vmem_limit_bytes)

    def pad_rows(a):
        return jnp.pad(a, ((0, B_pad - B), (0, 0))) if B_pad != B else a

    def wdt(a):   # matmul weights -> compute dtype (bf16 halves MXU work/DMA)
        return a.astype(cd)

    def bft(a):   # biases stay f32 (added to f32 accumulators)
        return a.astype(jnp.float32)

    # output_layer padded to 128-multiple columns (zero-filled) -> unmasked
    # full-lane stores; real columns sliced out afterwards.
    wo = wdt(jnp.pad(params["wo"], ((0, 0), (0, Dout_pad - Dout))))
    bo = bft(jnp.pad(params["bo"], ((0, 0), (0, Dout_pad - Dout))))

    o_spec = pl.BlockSpec((tile, Dout_pad), lambda i: (i, 0))
    out_shape = jax.ShapeDtypeStruct((B_pad, Dout_pad), out_dtype)

    def launch(kern, act, act_spec, weights, weight_pipeline_mode):
        def wspec(a):
            nd = a.ndim
            idx = lambda i, _nd=nd: (0,) * _nd   # constant block across grid
            if weight_pipeline_mode is None:
                return pl.BlockSpec(a.shape, idx)
            return pl.BlockSpec(a.shape, idx, pipeline_mode=weight_pipeline_mode)
        return pl.pallas_call(
            kern,
            out_shape=out_shape,
            grid=grid,
            in_specs=[act_spec] + [wspec(w) for w in weights],
            out_specs=o_spec,
            compiler_params=cparams,
        )(act, *weights)

    def launch_with_fallback(kern, act, act_spec, weights):
        # Single-buffer the constant weight operands (their block never
        # changes); fall back to default pipelining if unsupported.
        try:
            return launch(kern, act, act_spec, weights, pl.Buffered(1))
        except Exception:
            return launch(kern, act, act_spec, weights, None)

    if not use_mas:
        xp = pad_rows(x)                       # cast to compute dtype in-kernel
        x_spec = pl.BlockSpec((tile, Din), lambda i: (i, 0))
        ws = [wdt(params["w1"]), bft(params["b1"]),
              wdt(params["w2"]), bft(params["b2"]),
              wdt(params["w3"]), bft(params["b3"]),
              wo, bo]
        kern = partial(_block_kernel, tanh_dtype=tanh_dtype)
        out = launch_with_fallback(kern, xp, x_spec, ws)
        return out[:B, :Dout]

    assert extra is not None, "use_mas=True requires `extra`"
    E = extra.shape[1]
    DinE = Din + E

    # Fused zero_layer1 input: xe = [x | extra]   (single activation stream)
    xe = pad_rows(jnp.concatenate([x, extra], axis=1))
    xe_spec = pl.BlockSpec((tile, DinE), lambda i: (i, 0))

    # zero_layer1 weights stacked to (Din+E, Din) then zero-padded to Din+E
    # output columns so delta_x shares the padded-W1 layout.
    z1w = wdt(jnp.pad(jnp.concatenate([params["z1wx"], params["z1we"]], axis=0),
                      ((0, 0), (0, E))))
    z1b = bft(jnp.pad(params["z1b"], ((0, 0), (0, E))))
    w1p = wdt(jnp.pad(params["w1"], ((0, E), (0, 0))))   # E zero rows for `extra`

    ws = [z1w, z1b,
          w1p, bft(params["b1"]),
          wdt(params["w2"]), bft(params["b2"]),
          wdt(params["w3"]), bft(params["b3"]),
          wdt(params["z2wy"]), wdt(params["z2we"]), bft(params["z2b"]),
          wo, bo]
    kern = partial(_control_kernel, din=Din, tanh_dtype=tanh_dtype)
    out = launch_with_fallback(kern, xe, xe_spec, ws)
    return out[:B, :Dout]


# ---------------------- deterministic parameter init ----------------------- #

def _linear_init(key, fan_in, fan_out, dtype=jnp.float32):
    kw, kb = jax.random.split(key)
    # deterministic small init (synthetic; PyTorch uses kaiming-uniform)
    w = jax.random.normal(kw, (fan_in, fan_out), dtype) * 0.05
    b = jax.random.normal(kb, (1, fan_out), dtype) * 0.05
    return w, b


def make_params(key, input_dim, output_dim, hidden=(256, 256),
                use_mas=False, extra_dim=0, random_control=False):
    h0, h1 = hidden
    block_out = hidden[-1]            # Block/ControlBlock output dim == hidden[-1]
    k = jax.random.split(key, 8)
    p = {}
    # trainable Block: Linear(in,h0) tanh Linear(h0,h1) tanh last Linear(h1,block_out)
    p["w1"], p["b1"] = _linear_init(k[0], input_dim, h0)
    p["w2"], p["b2"] = _linear_init(k[1], h0, h1)
    p["w3"], p["b3"] = _linear_init(k[2], h1, block_out)
    # output_layer: Linear(hidden[-1], output_dim)
    p["wo"], p["bo"] = _linear_init(k[3], block_out, output_dim)
    if use_mas:
        if random_control:
            # non-zero control weights (as after training) to exercise the math
            p["z1wx"], p["z1b"] = _linear_init(k[4], input_dim, input_dim)
            p["z1we"], _ = _linear_init(k[5], extra_dim, input_dim)
            p["z2wy"], p["z2b"] = _linear_init(k[6], block_out, block_out)
            p["z2we"], _ = _linear_init(k[7], extra_dim, block_out)
        else:
            # zero_layer1 / zero_layer2 are constant_init(val=0) in ControlBlock.init()
            p["z1wx"] = jnp.zeros((input_dim, input_dim), jnp.float32)
            p["z1we"] = jnp.zeros((extra_dim, input_dim), jnp.float32)
            p["z1b"] = jnp.zeros((1, input_dim), jnp.float32)
            p["z2wy"] = jnp.zeros((block_out, block_out), jnp.float32)
            p["z2we"] = jnp.zeros((extra_dim, block_out), jnp.float32)
            p["z2b"] = jnp.zeros((1, block_out), jnp.float32)
        # TODO(synk): locked_block exists in the module but does not participate
        # in ControlBlock.forward, so it is intentionally not materialized here.
    return p


# ----------------------------- JAX reference -------------------------------- #

def _ref_block(p, x):
    h = jnp.tanh(x @ p["w1"] + p["b1"])
    h = jnp.tanh(h @ p["w2"] + p["b2"])
    return h @ p["w3"] + p["b3"]


def _ref_forward(p, x, extra=None, use_mas=False):
    if use_mas:
        delta_x = x @ p["z1wx"] + extra @ p["z1we"] + p["z1b"]
        y_ = _ref_block(p, x + delta_x)
        delta_y = y_ @ p["z2wy"] + extra @ p["z2we"] + p["z2b"]
        net = _ref_block(p, x) + delta_y
    else:
        net = _ref_block(p, x)
    return net @ p["wo"] + p["bo"]


# --------------------------------- main ------------------------------------ #

if __name__ == "__main__":
    key = jax.random.PRNGKey(0)
    kx, ke, kp1, kp2, kx2, ke2 = jax.random.split(key, 6)

    Din, E, Dout = 32, 8, 16
    hidden = (256, 256)

    # ---- small batch, f32 compute, tight tolerance ----
    B = 8
    x = jax.random.normal(kx, (B, Din), jnp.float32)
    extra = jax.random.normal(ke, (B, E), jnp.float32)

    p_plain = make_params(kp1, Din, Dout, hidden, use_mas=False)
    out_plain = jax.block_until_ready(
        controlnet_forward(p_plain, x, use_mas=False, compute_dtype=jnp.float32))
    ref_plain = _ref_forward(p_plain, x, use_mas=False)
    assert out_plain.shape == (B, Dout)
    assert jnp.allclose(out_plain, ref_plain, atol=1e-4, rtol=1e-4)

    p_mas = make_params(kp2, Din, Dout, hidden, use_mas=True, extra_dim=E,
                        random_control=True)
    out_mas = jax.block_until_ready(
        controlnet_forward(p_mas, x, extra, use_mas=True, compute_dtype=jnp.float32))
    ref_mas = _ref_forward(p_mas, x, extra, use_mas=True)
    assert out_mas.shape == (B, Dout)
    assert jnp.allclose(out_mas, ref_mas, atol=1e-4, rtol=1e-4)

    # ---- non-multiple batch (exercises row padding + 2-step grid),
    #      bf16 compute (+ bf16 tanh on v6e/v7x), loose tolerance ----
    B2 = 300
    x2 = jax.random.normal(kx2, (B2, Din), jnp.float32)
    extra2 = jax.random.normal(ke2, (B2, E), jnp.float32)

    out_plain2 = jax.block_until_ready(
        controlnet_forward(p_plain, x2, use_mas=False, compute_dtype=jnp.bfloat16))
    ref_plain2 = _ref_forward(p_plain, x2, use_mas=False)
    assert out_plain2.shape == (B2, Dout)
    assert jnp.allclose(out_plain2, ref_plain2, atol=5e-2, rtol=5e-2)

    out_mas2 = jax.block_until_ready(
        controlnet_forward(p_mas, x2, extra2, use_mas=True, compute_dtype=jnp.bfloat16))
    ref_mas2 = _ref_forward(p_mas, x2, extra2, use_mas=True)
    assert out_mas2.shape == (B2, Dout)
    assert jnp.allclose(out_mas2, ref_mas2, atol=5e-2, rtol=5e-2)

    print("KERNEL_OK")
</pallas_src>

<mosaic_0001>
module attributes {stable_mosaic.version = 11 : i64} {
  func.func @_block_kernel(%arg0: i32, %arg1: memref<8x32xf32, #tpu.memory_space<vmem>>, %arg2: memref<32x256xf32, #tpu.memory_space<vmem>>, %arg3: memref<1x256xf32, #tpu.memory_space<vmem>>, %arg4: memref<256x256xf32, #tpu.memory_space<vmem>>, %arg5: memref<1x256xf32, #tpu.memory_space<vmem>>, %arg6: memref<256x256xf32, #tpu.memory_space<vmem>>, %arg7: memref<1x256xf32, #tpu.memory_space<vmem>>, %arg8: memref<256x128xf32, #tpu.memory_space<vmem>>, %arg9: memref<1x128xf32, #tpu.memory_space<vmem>>, %arg10: memref<8x128xf32, #tpu.memory_space<vmem>>) attributes {dimension_semantics = [#tpu.dimension_semantics<parallel>], iteration_bounds = array<i64: 1>, scalar_prefetch = 0 : i64, scratch_operands = 0 : i64, tpu.core_type = #tpu.core_type<tc>, window_params = [{transform_indices = @transform_0, window_bounds = array<i64: 8, 32>}, {pipeline_mode = #tpu.pipeline_mode<synchronous>, transform_indices = @transform_1, window_bounds = array<i64: 32, 256>}, {pipeline_mode = #tpu.pipeline_mode<synchronous>, transform_indices = @transform_2, window_bounds = array<i64: 1, 256>}, {pipeline_mode = #tpu.pipeline_mode<synchronous>, transform_indices = @transform_3, window_bounds = array<i64: 256, 256>}, {pipeline_mode = #tpu.pipeline_mode<synchronous>, transform_indices = @transform_4, window_bounds = array<i64: 1, 256>}, {pipeline_mode = #tpu.pipeline_mode<synchronous>, transform_indices = @transform_5, window_bounds = array<i64: 256, 256>}, {pipeline_mode = #tpu.pipeline_mode<synchronous>, transform_indices = @transform_6, window_bounds = array<i64: 1, 256>}, {pipeline_mode = #tpu.pipeline_mode<synchronous>, transform_indices = @transform_7, window_bounds = array<i64: 256, 128>}, {pipeline_mode = #tpu.pipeline_mode<synchronous>, transform_indices = @transform_8, window_bounds = array<i64: 1, 128>}, {transform_indices = @transform_9, window_bounds = array<i64: 8, 128>}]} {
    %c0 = arith.constant 0 : index
    %c0_0 = arith.constant 0 : index
    %0 = vector.load %arg1[%c0, %c0_0] : memref<8x32xf32, #tpu.memory_space<vmem>>, vector<8x32xf32>
    %c0_1 = arith.constant 0 : index
    %c0_2 = arith.constant 0 : index
    %1 = vector.load %arg2[%c0_1, %c0_2] : memref<32x256xf32, #tpu.memory_space<vmem>>, vector<32x256xf32>
    %cst = arith.constant dense<0.000000e+00> : vector<8x256xf32>
    %2 = tpu.matmul %0, %1, %cst {dimension_numbers = #tpu.dot_dimension_numbers<[1], [0], [0], [1], [0, 0, 1, 1], [], []>} : vector<8x32xf32>, vector<32x256xf32>, vector<8x256xf32> -> vector<8x256xf32>
    %c0_3 = arith.constant 0 : index
    %c0_4 = arith.constant 0 : index
    %3 = vector.load %arg3[%c0_3, %c0_4] : memref<1x256xf32, #tpu.memory_space<vmem>>, vector<1x256xf32>
    %4 = vector.broadcast %3 : vector<1x256xf32> to vector<8x256xf32>
    %5 = arith.addf %2, %4 : vector<8x256xf32>
    %6 = math.tanh %5 : vector<8x256xf32>
    %c0_5 = arith.constant 0 : index
    %c0_6 = arith.constant 0 : index
    %7 = vector.load %arg4[%c0_5, %c0_6] : memref<256x256xf32, #tpu.memory_space<vmem>>, vector<256x256xf32>
    %cst_7 = arith.constant dense<0.000000e+00> : vector<8x256xf32>
    %8 = tpu.matmul %6, %7, %cst_7 {dimension_numbers = #tpu.dot_dimension_numbers<[1], [0], [0], [1], [0, 0, 1, 1], [], []>} : vector<8x256xf32>, vector<256x256xf32>, vector<8x256xf32> -> vector<8x256xf32>
    %c0_8 = arith.constant 0 : index
    %c0_9 = arith.constant 0 : index
    %9 = vector.load %arg5[%c0_8, %c0_9] : memref<1x256xf32, #tpu.memory_space<vmem>>, vector<1x256xf32>
    %10 = vector.broadcast %9 : vector<1x256xf32> to vector<8x256xf32>
    %11 = arith.addf %8, %10 : vector<8x256xf32>
    %12 = math.tanh %11 : vector<8x256xf32>
    %c0_10 = arith.constant 0 : index
    %c0_11 = arith.constant 0 : index
    %13 = vector.load %arg6[%c0_10, %c0_11] : memref<256x256xf32, #tpu.memory_space<vmem>>, vector<256x256xf32>
    %cst_12 = arith.constant dense<0.000000e+00> : vector<8x256xf32>
    %14 = tpu.matmul %12, %13, %cst_12 {dimension_numbers = #tpu.dot_dimension_numbers<[1], [0], [0], [1], [0, 0, 1, 1], [], []>} : vector<8x256xf32>, vector<256x256xf32>, vector<8x256xf32> -> vector<8x256xf32>
    %c0_13 = arith.constant 0 : index
    %c0_14 = arith.constant 0 : index
    %15 = vector.load %arg7[%c0_13, %c0_14] : memref<1x256xf32, #tpu.memory_space<vmem>>, vector<1x256xf32>
    %16 = vector.broadcast %15 : vector<1x256xf32> to vector<8x256xf32>
    %17 = arith.addf %14, %16 : vector<8x256xf32>
    %c0_15 = arith.constant 0 : index
    %c0_16 = arith.constant 0 : index
    %18 = vector.load %arg8[%c0_15, %c0_16] : memref<256x128xf32, #tpu.memory_space<vmem>>, vector<256x128xf32>
    %cst_17 = arith.constant dense<0.000000e+00> : vector<8x128xf32>
    %19 = tpu.matmul %17, %18, %cst_17 {dimension_numbers = #tpu.dot_dimension_numbers<[1], [0], [0], [1], [0, 0, 1, 1], [], []>} : vector<8x256xf32>, vector<256x128xf32>, vector<8x128xf32> -> vector<8x128xf32>
    %c0_18 = arith.constant 0 : index
    %c0_19 = arith.constant 0 : index
    %20 = vector.load %arg9[%c0_18, %c0_19] : memref<1x128xf32, #tpu.memory_space<vmem>>, vector<1x128xf32>
    %21 = vector.broadcast %20 : vector<1x128xf32> to vector<8x128xf32>
    %22 = arith.addf %19, %21 : vector<8x128xf32>
    %c0_20 = arith.constant 0 : index
    %c0_21 = arith.constant 0 : index
    %23 = vector.load %arg10[%c0_20, %c0_21] : memref<8x128xf32, #tpu.memory_space<vmem>>, vector<8x128xf32>
    tpu.vector_store %arg10[%c0_20, %c0_21], %22 {strides = array<i32>} : memref<8x128xf32, #tpu.memory_space<vmem>>, vector<8x128xf32>,
    return
  }
  func.func @transform_0(%arg0: i32) -> (i32, i32) {
    %c0_i32 = arith.constant 0 : i32
    %c0_i32_0 = arith.constant 0 : i32
    return %arg0, %c0_i32 : i32, i32
  }
  func.func @transform_1(%arg0: i32) -> (i32, i32) {
    %c0_i32 = arith.constant 0 : i32
    %c0_i32_0 = arith.constant 0 : i32
    %c0_i32_1 = arith.constant 0 : i32
    return %c0_i32, %c0_i32_0 : i32, i32
  }
  func.func @transform_2(%arg0: i32) -> (i32, i32) {
    %c0_i32 = arith.constant 0 : i32
    %c0_i32_0 = arith.constant 0 : i32
    %c0_i32_1 = arith.constant 0 : i32
    return %c0_i32, %c0_i32_0 : i32, i32
  }
  func.func @transform_3(%arg0: i32) -> (i32, i32) {
    %c0_i32 = arith.constant 0 : i32
    %c0_i32_0 = arith.constant 0 : i32
    %c0_i32_1 = arith.constant 0 : i32
    return %c0_i32, %c0_i32_0 : i32, i32
  }
  func.func @transform_4(%arg0: i32) -> (i32, i32) {
    %c0_i32 = arith.constant 0 : i32
    %c0_i32_0 = arith.constant 0 : i32
    %c0_i32_1 = arith.constant 0 : i32
    return %c0_i32, %c0_i32_0 : i32, i32
  }
  func.func @transform_5(%arg0: i32) -> (i32, i32) {
    %c0_i32 = arith.constant 0 : i32
    %c0_i32_0 = arith.constant 0 : i32
    %c0_i32_1 = arith.constant 0 : i32
    return %c0_i32, %c0_i32_0 : i32, i32
  }
  func.func @transform_6(%arg0: i32) -> (i32, i32) {
    %c0_i32 = arith.constant 0 : i32
    %c0_i32_0 = arith.constant 0 : i32
    %c0_i32_1 = arith.constant 0 : i32
    return %c0_i32, %c0_i32_0 : i32, i32
  }
  func.func @transform_7(%arg0: i32) -> (i32, i32) {
    %c0_i32 = arith.constant 0 : i32
    %c0_i32_0 = arith.constant 0 : i32
    %c0_i32_1 = arith.constant 0 : i32
    return %c0_i32, %c0_i32_0 : i32, i32
  }
  func.func @transform_8(%arg0: i32) -> (i32, i32) {
    %c0_i32 = arith.constant 0 : i32
    %c0_i32_0 = arith.constant 0 : i32
    %c0_i32_1 = arith.constant 0 : i32
    return %c0_i32, %c0_i32_0 : i32, i32
  }
  func.func @transform_9(%arg0: i32) -> (i32, i32) {
    %c0_i32 = arith.constant 0 : i32
    %c0_i32_0 = arith.constant 0 : i32
    return %arg0, %c0_i32 : i32, i32
  }
}

module attributes {stable_mosaic.version = 11 : i64} {
  func.func @_block_kernel(%arg0: i32, %arg1: memref<8x32xf32, #tpu.memory_space<vmem>>, %arg2: memref<32x256xf32, #tpu.memory_space<vmem>>, %arg3: memref<1x256xf32, #tpu.memory_space<vmem>>, %arg4: memref<256x256xf32, #tpu.memory_space<vmem>>, %arg5: memref<1x256xf32, #tpu.memory_space<vmem>>, %arg6: memref<256x256xf32, #tpu.memory_space<vmem>>, %arg7: memref<1x256xf32, #tpu.memory_space<vmem>>, %arg8: memref<256x128xf32, #tpu.memory_space<vmem>>, %arg9: memref<1x128xf32, #tpu.memory_space<vmem>>, %arg10: memref<8x128xf32, #tpu.memory_space<vmem>>) attributes {dimension_semantics = [#tpu.dimension_semantics<parallel>], iteration_bounds = array<i64: 1>, scalar_prefetch = 0 : i64, scratch_operands = 0 : i64, tpu.core_type = #tpu.core_type<tc>, window_params = [{transform_indices = @transform_0, window_bounds = array<i64: 8, 32>}, {pipeline_mode = #tpu.pipeline_mode<synchronous>, transform_indices = @transform_1, window_bounds = array<i64: 32, 256>}, {pipeline_mode = #tpu.pipeline_mode<synchronous>, transform_indices = @transform_2, window_bounds = array<i64: 1, 256>}, {pipeline_mode = #tpu.pipeline_mode<synchronous>, transform_indices = @transform_3, window_bounds = array<i64: 256, 256>}, {pipeline_mode = #tpu.pipeline_mode<synchronous>, transform_indices = @transform_4, window_bounds = array<i64: 1, 256>}, {pipeline_mode = #tpu.pipeline_mode<synchronous>, transform_indices = @transform_5, window_bounds = array<i64: 256, 256>}, {pipeline_mode = #tpu.pipeline_mode<synchronous>, transform_indices = @transform_6, window_bounds = array<i64: 1, 256>}, {pipeline_mode = #tpu.pipeline_mode<synchronous>, transform_indices = @transform_7, window_bounds = array<i64: 256, 128>}, {pipeline_mode = #tpu.pipeline_mode<synchronous>, transform_indices = @transform_8, window_bounds = array<i64: 1, 128>}, {transform_indices = @transform_9, window_bounds = array<i64: 8, 128>}]} {
    %c0 = arith.constant 0 : index
    %c0_0 = arith.constant 0 : index
    %0 = vector.load %arg1[%c0, %c0_0] : memref<8x32xf32, #tpu.memory_space<vmem>>, vector<8x32xf32>
    %c0_1 = arith.constant 0 : index
    %c0_2 = arith.constant 0 : index
    %1 = vector.load %arg2[%c0_1, %c0_2] : memref<32x256xf32, #tpu.memory_space<vmem>>, vector<32x256xf32>
    %cst = arith.constant dense<0.000000e+00> : vector<8x256xf32>
    %2 = tpu.matmul %0, %1, %cst {dimension_numbers = #tpu.dot_dimension_numbers<[1], [0], [0], [1], [0, 0, 1, 1], [], []>} : vector<8x32xf32>, vector<32x256xf32>, vector<8x256xf32> -> vector<8x256xf32>
    %c0_3 = arith.constant 0 : index
    %c0_4 = arith.constant 0 : index
    %3 = vector.load %arg3[%c0_3, %c0_4] : memref<1x256xf32, #tpu.memory_space<vmem>>, vector<1x256xf32>
    %4 = vector.broadcast %3 : vector<1x256xf32> to vector<8x256xf32>
    %5 = arith.addf %2, %4 : vector<8x256xf32>
    %6 = math.tanh %5 : vector<8x256xf32>
    %c0_5 = arith.constant 0 : index
    %c0_6 = arith.constant 0 : index
    %7 = vector.load %arg4[%c0_5, %c0_6] : memref<256x256xf32, #tpu.memory_space<vmem>>, vector<256x256xf32>
    %cst_7 = arith.constant dense<0.000000e+00> : vector<8x256xf32>
    %8 = tpu.matmul %6, %7, %cst_7 {dimension_numbers = #tpu.dot_dimension_numbers<[1], [0], [0], [1], [0, 0, 1, 1], [], []>} : vector<8x256xf32>, vector<256x256xf32>, vector<8x256xf32> -> vector<8x256xf32>
    %c0_8 = arith.constant 0 : index
    %c0_9 = arith.constant 0 : index
    %9 = vector.load %arg5[%c0_8, %c0_9] : memref<1x256xf32, #tpu.memory_space<vmem>>, vector<1x256xf32>
    %10 = vector.broadcast %9 : vector<1x256xf32> to vector<8x256xf32>
    %11 = arith.addf %8, %10 : vector<8x256xf32>
    %12 = math.tanh %11 : vector<8x256xf32>
    %c0_10 = arith.constant 0 : index
    %c0_11 = arith.constant 0 : index
    %13 = vector.load %arg6[%c0_10, %c0_11] : memref<256x256xf32, #tpu.memory_space<vmem>>, vector<256x256xf32>
    %cst_12 = arith.constant dense<0.000000e+00> : vector<8x256xf32>
    %14 = tpu.matmul %12, %13, %cst_12 {dimension_numbers = #tpu.dot_dimension_numbers<[1], [0], [0], [1], [0, 0, 1, 1], [], []>} : vector<8x256xf32>, vector<256x256xf32>, vector<8x256xf32> -> vector<8x256xf32>
    %c0_13 = arith.constant 0 : index
    %c0_14 = arith.constant 0 : index
    %15 = vector.load %arg7[%c0_13, %c0_14] : memref<1x256xf32, #tpu.memory_space<vmem>>, vector<1x256xf32>
    %16 = vector.broadcast %15 : vector<1x256xf32> to vector<8x256xf32>
    %17 = arith.addf %14, %16 : vector<8x256xf32>
    %c0_15 = arith.constant 0 : index
    %c0_16 = arith.constant 0 : index
    %18 = vector.load %arg8[%c0_15, %c0_16] : memref<256x128xf32, #tpu.memory_space<vmem>>, vector<256x128xf32>
    %cst_17 = arith.constant dense<0.000000e+00> : vector<8x128xf32>
    %19 = tpu.matmul %17, %18, %cst_17 {dimension_numbers = #tpu.dot_dimension_numbers<[1], [0], [0], [1], [0, 0, 1, 1], [], []>} : vector<8x256xf32>, vector<256x128xf32>, vector<8x128xf32> -> vector<8x128xf32>
    %c0_18 = arith.constant 0 : index
    %c0_19 = arith.constant 0 : index
    %20 = vector.load %arg9[%c0_18, %c0_19] : memref<1x128xf32, #tpu.memory_space<vmem>>, vector<1x128xf32>
    %21 = vector.broadcast %20 : vector<1x128xf32> to vector<8x128xf32>
    %22 = arith.addf %19, %21 : vector<8x128xf32>
    %c0_20 = arith.constant 0 : index
    %c0_21 = arith.constant 0 : index
    %23 = vector.load %arg10[%c0_20, %c0_21] : memref<8x128xf32, #tpu.memory_space<vmem>>, vector<8x128xf32>
    tpu.vector_store %arg10[%c0_20, %c0_21], %22 {strides = array<i32>} : memref<8x128xf32, #tpu.memory_space<vmem>>, vector<8x128xf32>,
    return
  }
  func.func @transform_0(%arg0: i32) -> (i32, i32) {
    %c0_i32 = arith.constant 0 : i32
    %c0_i32_0 = arith.constant 0 : i32
    return %arg0, %c0_i32 : i32, i32
  }
  func.func @transform_1(%arg0: i32) -> (i32, i32) {
    %c0_i32 = arith.constant 0 : i32
    %c0_i32_0 = arith.constant 0 : i32
    %c0_i32_1 = arith.constant 0 : i32
    return %c0_i32, %c0_i32_0 : i32, i32
  }
  func.func @transform_2(%arg0: i32) -> (i32, i32) {
    %c0_i32 = arith.constant 0 : i32
    %c0_i32_0 = arith.constant 0 : i32
    %c0_i32_1 = arith.constant 0 : i32
    return %c0_i32, %c0_i32_0 : i32, i32
  }
  func.func @transform_3(%arg0: i32) -> (i32, i32) {
    %c0_i32 = arith.constant 0 : i32
    %c0_i32_0 = arith.constant 0 : i32
    %c0_i32_1 = arith.constant 0 : i32
    return %c0_i32, %c0_i32_0 : i32, i32
  }
  func.func @transform_4(%arg0: i32) -> (i32, i32) {
    %c0_i32 = arith.constant 0 : i32
    %c0_i32_0 = arith.constant 0 : i32
    %c0_i32_1 = arith.constant 0 : i32
    return %c0_i32, %c0_i32_0 : i32, i32
  }
  func.func @transform_5(%arg0: i32) -> (i32, i32) {
    %c0_i32 = arith.constant 0 : i32
    %c0_i32_0 = arith.constant 0 : i32
    %c0_i32_1 = arith.constant 0 : i32
    return %c0_i32, %c0_i32_0 : i32, i32
  }
  func.func @transform_6(%arg0: i32) -> (i32, i32) {
    %c0_i32 = arith.constant 0 : i32
    %c0_i32_0 = arith.constant 0 : i32
    %c0_i32_1 = arith.constant 0 : i32
    return %c0_i32, %c0_i32_0 : i32, i32
  }
  func.func @transform_7(%arg0: i32) -> (i32, i32) {
    %c0_i32 = arith.constant 0 : i32
    %c0_i32_0 = arith.constant 0 : i32
    %c0_i32_1 = arith.constant 0 : i32
    return %c0_i32, %c0_i32_0 : i32, i32
  }
  func.func @transform_8(%arg0: i32) -> (i32, i32) {
    %c0_i32 = arith.constant 0 : i32
    %c0_i32_0 = arith.constant 0 : i32
    %c0_i32_1 = arith.constant 0 : i32
    return %c0_i32, %c0_i32_0 : i32, i32
  }
  func.func @transform_9(%arg0: i32) -> (i32, i32) {
    %c0_i32 = arith.constant 0 : i32
    %c0_i32_0 = arith.constant 0 : i32
    return %arg0, %c0_i32 : i32, i32
  }
}

</mosaic_0001>

<llo_original>
// kernel: tpu_custom_call.1
$region0: #{tpu_custom_call.1}
  #allocation0 [shape = 'u32[]', space=smem, size = 0x4, offset = 0x4, fixed_abs, tag = 'smem constant byte address 0x4 - core index']
  #allocation1 [shape = 'u32[72,128]{1,0:T(1,128)}', space=vmem, size = 0x9000, scoped, tag = 'internal scratch']
  %s0 = inlined_call_operand.hbm [shape: f32[8,32], index: 0, kind: input, shape index: {}]
  %s1 = inlined_call_operand.hbm [shape: f32[32,256], index: 1, kind: input, shape index: {}]
  %s2 = inlined_call_operand.hbm [shape: f32[1,256], index: 2, kind: input, shape index: {}]
  %s3 = inlined_call_operand.hbm [shape: f32[256,256], index: 3, kind: input, shape index: {}]
  %s4 = inlined_call_operand.vmem [shape: f32[1,256], index: 4, kind: input, shape index: {}]
  %s5 = inlined_call_operand.hbm [shape: f32[256,256], index: 5, kind: input, shape index: {}]
  %s6 = inlined_call_operand.vmem [shape: f32[1,256], index: 6, kind: input, shape index: {}]
  %s7 = inlined_call_operand.hbm [shape: f32[256,128], index: 7, kind: input, shape index: {}]
  %s8 = inlined_call_operand.vmem [shape: f32[1,128], index: 8, kind: input, shape index: {}]
  %s9 = inlined_call_operand.hbm [shape: f32[8,128], index: 9, kind: output, shape index: {}]
  %s10 = sld [smem:[#allocation0]]
  $region70: #{tpu_custom_call.1} parent=0
    _
  %s12 = ssub.s32 1, %s10
  %s13 = scalar_select 0, %s12, %s10
  $region1: #{tpu_custom_call.1} parent=0
    #allocation2 [shape = 'u8[4096]{0}', space=vmem, size = 0x1000, scoped, tag = 'input window, operand 0, single buffered']
    #allocation3 [shape = 's32[1]{0}', space=sflag, size = 0x4, scoped, tag = 'scoped memory for tpu_custom_call.1']
    #allocation4 [shape = 's32[1]{0}', space=sflag, size = 0x4, scoped, tag = 'scoped memory for tpu_custom_call.1']
    #allocation5 [shape = 'u8[32768]{0}', space=vmem, size = 0x8000, scoped, tag = 'input window, operand 1, single buffered']
    #allocation6 [shape = 's32[1]{0}', space=sflag, size = 0x4, scoped, tag = 'scoped memory for tpu_custom_call.1']
    #allocation7 [shape = 'u8[1024]{0}', space=vmem, size = 0x400, scoped, tag = 'input window, operand 2, single buffered']
    #allocation8 [shape = 'u8[262144]{0}', space=vmem, size = 0x40000, scoped, tag = 'input window, operand 3, single buffered']
    #allocation9 [shape = 's32[1]{0}', space=sflag, size = 0x4, scoped, tag = 'scoped memory for tpu_custom_call.1']
    #allocation10 [shape = 'u8[262144]{0}', space=vmem, size = 0x40000, scoped, tag = 'input window, operand 5, single buffered']
    #allocation11 [shape = 'u8[131072]{0}', space=vmem, size = 0x20000, scoped, tag = 'input window, operand 7, single buffered']
    #allocation12 [shape = 's32[1]{0}', space=sflag, size = 0x4, scoped, tag = 'scoped memory for tpu_custom_call.1']
    #allocation13 [shape = 'u8[4096]{0}', space=vmem, size = 0x1000, scoped, tag = 'output window, operand 0, single buffered']
    %14 = vsyncpa [#allocation3], 0
    %15 = vsyncpa [#allocation6], 0
    %16 = vsyncpa [#allocation9], 0
    %17 = vsyncpa [#allocation12], 0
    %18 = vsyncpa [#allocation4], 0
    // Predicated region
    $region2: #{tpu_custom_call.1} parent=1 // pred_check
      _
    $region3: #{tpu_custom_call.1} parent=1 // pred_check_branch
      %20 = sbr.rel (0) target = $region5
    $region4: #{tpu_custom_call.1} parent=1 // pred_region
      %22 = vsyncadd [#allocation3], 0
      %s24 = sshll.u32 %s0, 4
      %s25 = int_to_ptr.hbm [resolvable:$true] %s24
      %s26 = sshll.u32 [#allocation2], 4
      %s27 = int_to_ptr.vmem [resolvable:$true] %s26
      %29 = dma.hbm_to_vmem [thread:$0]  %s25, 128, %s27, [#allocation3]
    $region5: #{tpu_custom_call.1} parent=1 // pred_fallthru
      _
    // Predicated region
    $region6: #{tpu_custom_call.1} parent=1 // pred_check
      _
    $region7: #{tpu_custom_call.1} parent=1 // pred_check_branch
      %31 = sbr.rel (0) target = $region9
    $region8: #{tpu_custom_call.1} parent=1 // pred_region
      %33 = vsyncadd [#allocation6], 0
      %s34 = sshll.u32 %s1, 4
      %s35 = int_to_ptr.hbm [resolvable:$true] %s34
      %s36 = sshll.u32 [#allocation5], 4
      %s37 = int_to_ptr.vmem [resolvable:$true] %s36
      %42 = dma.hbm_to_vmem [thread:$0]  %s35, 1024, %s37, [#allocation6], 256, 256, 16
    $region9: #{tpu_custom_call.1} parent=1 // pred_fallthru
      _
    // Predicated region
    $region10: #{tpu_custom_call.1} parent=1 // pred_check
      _
    $region11: #{tpu_custom_call.1} parent=1 // pred_check_branch
      %44 = sbr.rel (0) target = $region13
    $region12: #{tpu_custom_call.1} parent=1 // pred_region
      %46 = vsyncadd [#allocation6], 0
      %s48 = sshll.u32 %s2, 4
      %s49 = int_to_ptr.hbm [resolvable:$true] %s48
      %s50 = sshll.u32 [#allocation7], 4
      %s51 = int_to_ptr.vmem [resolvable:$true] %s50
      %53 = dma.hbm_to_vmem [thread:$0]  %s49, 32, %s51, [#allocation6]
    $region13: #{tpu_custom_call.1} parent=1 // pred_fallthru
      _
    // Predicated region
    $region14: #{tpu_custom_call.1} parent=1 // pred_check
      _
    $region15: #{tpu_custom_call.1} parent=1 // pred_check_branch
      %55 = sbr.rel (0) target = $region17
    $region16: #{tpu_custom_call.1} parent=1 // pred_region
      %57 = vsyncadd [#allocation9], 0
      %s58 = sshll.u32 %s3, 4
      %s59 = int_to_ptr.hbm [resolvable:$true] %s58
      %s60 = sshll.u32 [#allocation8], 4
      %s61 = int_to_ptr.vmem [resolvable:$true] %s60
      %66 = dma.hbm_to_vmem [thread:$0]  %s59, 8192, %s61, [#allocation9], 256, 256, 16
    $region17: #{tpu_custom_call.1} parent=1 // pred_fallthru
      _
    // Predicated region
    $region18: #{tpu_custom_call.1} parent=1 // pred_check
      _
    $region19: #{tpu_custom_call.1} parent=1 // pred_check_branch
      %68 = sbr.rel (0) target = $region21
    $region20: #{tpu_custom_call.1} parent=1 // pred_region
      _
    $region21: #{tpu_custom_call.1} parent=1 // pred_fallthru
      _
    // Predicated region
    $region22: #{tpu_custom_call.1} parent=1 // pred_check
      _
    $region23: #{tpu_custom_call.1} parent=1 // pred_check_branch
      %70 = sbr.rel (0) target = $region25
    $region24: #{tpu_custom_call.1} parent=1 // pred_region
      %72 = vsyncadd [#allocation9], 0
      %s73 = sshll.u32 %s5, 4
      %s74 = int_to_ptr.hbm [resolvable:$true] %s73
      %s75 = sshll.u32 [#allocation10], 4
      %s76 = int_to_ptr.vmem [resolvable:$true] %s75
      %81 = dma.hbm_to_vmem [thread:$0]  %s74, 8192, %s76, [#allocation9], 256, 256, 16
    $region25: #{tpu_custom_call.1} parent=1 // pred_fallthru
      _
    // Predicated region
    $region26: #{tpu_custom_call.1} parent=1 // pred_check
      _
    $region27: #{tpu_custom_call.1} parent=1 // pred_check_branch
      %83 = sbr.rel (0) target = $region29
    $region28: #{tpu_custom_call.1} parent=1 // pred_region
      _
    $region29: #{tpu_custom_call.1} parent=1 // pred_fallthru
      _
    // Predicated region
    $region30: #{tpu_custom_call.1} parent=1 // pred_check
      _
    $region31: #{tpu_custom_call.1} parent=1 // pred_check_branch
      %85 = sbr.rel (0) target = $region33
    $region32: #{tpu_custom_call.1} parent=1 // pred_region
      %87 = vsyncadd [#allocation12], 0
      %s88 = sshll.u32 %s7, 4
      %s89 = int_to_ptr.hbm [resolvable:$true] %s88
      %s90 = sshll.u32 [#allocation11], 4
      %s91 = int_to_ptr.vmem [resolvable:$true] %s90
      %96 = dma.hbm_to_vmem [thread:$0]  %s89, 4096, %s91, [#allocation12], 128, 128, 8
    $region33: #{tpu_custom_call.1} parent=1 // pred_fallthru
      _
    // Predicated region
    $region34: #{tpu_custom_call.1} parent=1 // pred_check
      _
    $region35: #{tpu_custom_call.1} parent=1 // pred_check_branch
      %98 = sbr.rel (0) target = $region37
    $region36: #{tpu_custom_call.1} parent=1 // pred_region
      _
    $region37: #{tpu_custom_call.1} parent=1 // pred_fallthru
      _
    // Predicated region
    $region38: #{tpu_custom_call.1} parent=1 // pred_check
      _
    $region39: #{tpu_custom_call.1} parent=1 // pred_check_branch
      %100 = sbr.rel (0) target = $region41
    $region40: #{tpu_custom_call.1} parent=1 // pred_region
      %102 = dma.done [#allocation3], 128
    $region41: #{tpu_custom_call.1} parent=1 // pred_fallthru
      _
    // Predicated region
    $region42: #{tpu_custom_call.1} parent=1 // pred_check
      _
    $region43: #{tpu_custom_call.1} parent=1 // pred_check_branch
      %104 = sbr.rel (0) target = $region45
    $region44: #{tpu_custom_call.1} parent=1 // pred_region
      %106 = dma.done [#allocation6], 1024
    $region45: #{tpu_custom_call.1} parent=1 // pred_fallthru
      _
    // Predicated region
    $region46: #{tpu_custom_call.1} parent=1 // pred_check
      _
    $region47: #{tpu_custom_call.1} parent=1 // pred_check_branch
      %108 = sbr.rel (0) target = $region49
    $region48: #{tpu_custom_call.1} parent=1 // pred_region
      %110 = dma.done [#allocation6], 32
    $region49: #{tpu_custom_call.1} parent=1 // pred_fallthru
      _
    // Predicated region
    $region50: #{tpu_custom_call.1} parent=1 // pred_check
      _
    $region51: #{tpu_custom_call.1} parent=1 // pred_check_branch
      %112 = sbr.rel (0) target = $region53
    $region52: #{tpu_custom_call.1} parent=1 // pred_region
      %114 = dma.done [#allocation9], 8192
    $region53: #{tpu_custom_call.1} parent=1 // pred_fallthru
      _
    // Predicated region
    $region54: #{tpu_custom_call.1} parent=1 // pred_check
      _
    $region55: #{tpu_custom_call.1} parent=1 // pred_check_branch
      %116 = sbr.rel (0) target = $region57
    $region56: #{tpu_custom_call.1} parent=1 // pred_region
      %118 = dma.done [#allocation9], 8192
    $region57: #{tpu_custom_call.1} parent=1 // pred_fallthru
      _
    // Predicated region
    $region58: #{tpu_custom_call.1} parent=1 // pred_check
      _
    $region59: #{tpu_custom_call.1} parent=1 // pred_check_branch
      %120 = sbr.rel (0) target = $region61
    $region60: #{tpu_custom_call.1} parent=1 // pred_region
      %122 = dma.done [#allocation12], 4096
    $region61: #{tpu_custom_call.1} parent=1 // pred_fallthru
      _
    %v123 = vld [vmem:[#allocation2] sm:$0xff]
    %v124 = vld [vmem:[#allocation5] sm:$0xff]
    %v125 = vld [vmem:[#allocation5 + $0x8] sm:$0xff]
    %v126 = vld [vmem:[#allocation5 + $0x10] sm:$0xff]
    %v127 = vld [vmem:[#allocation5 + $0x18] sm:$0xff]
    %v128 = vld [vmem:[#allocation5 + $0x20] sm:$0xff]
    %v129 = vld [vmem:[#allocation5 + $0x28] sm:$0xff]
    %v130 = vld [vmem:[#allocation5 + $0x30] sm:$0xff]
    %v131 = vld [vmem:[#allocation5 + $0x38] sm:$0xff]
    %v132 = vld [vmem:[#allocation7] sm:$0x3]
    %v134 = vperm.slane %v132, 0
    %v135 = vperm.slane %v132, 1
    %vm138 = vcmask 261120
    %v140 = vsel %vm138, %v123, 0
    %142 = vmatpush.msra.mxu0 0.0
    %143 = vmatpush.msra.mxu0 0.0
    %144 = vmatpush.msra.mxu0 0.0
    %145 = vmatpush.msra.mxu0 0.0
    %146 = vmatpush.msra.mxu0 0.0
    %147 = vmatpush.msra.mxu0 0.0
    %148 = vmatpush.msra.mxu0 0.0
    %149 = vmatpush.msra.mxu0 0.0
    %150 = vmatpush.msra.mxu0 0.0
    %151 = vmatpush.msra.mxu0 0.0
    %152 = vmatpush.msra.mxu0 0.0
    %153 = vmatpush.msra.mxu0 0.0
    %154 = vmatpush.msra.mxu0 %v130
    %155 = vmatpush.msra.mxu0 %v128
    %156 = vmatpush.msra.mxu0 %v126
    %157 = vmatpush.msra.mxu0 %v124
    %158 = vmatmul.f32.gmra.mxu0 %v140
    %v159 = vpop.f32.mrf.mxu0
    %v160 = vadd.f32 %v134, %v159
    %161 = vdwg.mxu0
    %162 = vmatpush.msra.mxu0 0.0
    %163 = vmatpush.msra.mxu0 0.0
    %164 = vmatpush.msra.mxu0 0.0
    %165 = vmatpush.msra.mxu0 0.0
    %166 = vmatpush.msra.mxu0 0.0
    %167 = vmatpush.msra.mxu0 0.0
    %168 = vmatpush.msra.mxu0 0.0
    %169 = vmatpush.msra.mxu0 0.0
    %170 = vmatpush.msra.mxu0 0.0
    %171 = vmatpush.msra.mxu0 0.0
    %172 = vmatpush.msra.mxu0 0.0
    %173 = vmatpush.msra.mxu0 0.0
    %174 = vmatpush.msra.mxu0 %v131
    %175 = vmatpush.msra.mxu0 %v129
    %176 = vmatpush.msra.mxu0 %v127
    %177 = vmatpush.msra.mxu0 %v125
    %178 = vmatmul.f32.gmra.mxu0 %v140
    %v179 = vpop.f32.mrf.mxu0
    %v180 = vadd.f32 %v135, %v179
    %181 = vdwg.mxu0
    %v182 = vtanh.pop %v160
    %v183 = vtanh.pop %v180
    %v184 = vld [vmem:[#allocation8] sm:$0xff]
    %v185 = vld [vmem:[#allocation8 + $0x8] sm:$0xff]
    %v186 = vld [vmem:[#allocation8 + $0x10] sm:$0xff]
    %v187 = vld [vmem:[#allocation8 + $0x18] sm:$0xff]
    %v188 = vld [vmem:[#allocation8 + $0x20] sm:$0xff]
    %v189 = vld [vmem:[#allocation8 + $0x28] sm:$0xff]
    %v190 = vld [vmem:[#allocation8 + $0x30] sm:$0xff]
    %v191 = vld [vmem:[#allocation8 + $0x38] sm:$0xff]
    %v192 = vld [vmem:[#allocation8 + $0x40] sm:$0xff]
    %v193 = vld [vmem:[#allocation8 + $0x48] sm:$0xff]
    %v194 = vld [vmem:[#allocation8 + $0x50] sm:$0xff]
    %v195 = vld [vmem:[#allocation8 + $0x58] sm:$0xff]
    %v196 = vld [vmem:[#allocation8 + $0x60] sm:$0xff]
    %v197 = vld [vmem:[#allocation8 + $0x68] sm:$0xff]
    %v198 = vld [vmem:[#allocation8 + $0x70] sm:$0xff]
    %v199 = vld [vmem:[#allocation8 + $0x78] sm:$0xff]
    %v200 = vld [vmem:[#allocation8 + $0x80] sm:$0xff]
    %v201 = vld [vmem:[#allocation8 + $0x88] sm:$0xff]
    %v202 = vld [vmem:[#allocation8 + $0x90] sm:$0xff]
    %v203 = vld [vmem:[#allocation8 + $0x98] sm:$0xff]
    %v204 = vld [vmem:[#allocation8 + $0xa0] sm:$0xff]
    %v205 = vld [vmem:[#allocation8 + $0xa8] sm:$0xff]
    %v206 = vld [vmem:[#allocation8 + $0xb0] sm:$0xff]
    %v207 = vld [vmem:[#allocation8 + $0xb8] sm:$0xff]
    %v208 = vld [vmem:[#allocation8 + $0xc0] sm:$0xff]
    %v209 = vld [vmem:[#allocation8 + $0xc8] sm:$0xff]
    %v210 = vld [vmem:[#allocation8 + $0xd0] sm:$0xff]
    %v211 = vld [vmem:[#allocation8 + $0xd8] sm:$0xff]
    %v212 = vld [vmem:[#allocation8 + $0xe0] sm:$0xff]
    %v213 = vld [vmem:[#allocation8 + $0xe8] sm:$0xff]
    %v214 = vld [vmem:[#allocation8 + $0xf0] sm:$0xff]
    %v215 = vld [vmem:[#allocation8 + $0xf8] sm:$0xff]
    %v216 = vld [vmem:[#allocation8 + $0x100] sm:$0xff]
    %v217 = vld [vmem:[#allocation8 + $0x108] sm:$0xff]
    %v218 = vld [vmem:[#allocation8 + $0x110] sm:$0xff]
    %v219 = vld [vmem:[#allocation8 + $0x118] sm:$0xff]
    %v220 = vld [vmem:[#allocation8 + $0x120] sm:$0xff]
    %v221 = vld [vmem:[#allocation8 + $0x128] sm:$0xff]
    %v222 = vld [vmem:[#allocation8 + $0x130] sm:$0xff]
    %v223 = vld [vmem:[#allocation8 + $0x138] sm:$0xff]
    %v224 = vld [vmem:[#allocation8 + $0x140] sm:$0xff]
    %v225 = vld [vmem:[#allocation8 + $0x148] sm:$0xff]
    %v226 = vld [vmem:[#allocation8 + $0x150] sm:$0xff]
    %v227 = vld [vmem:[#allocation8 + $0x158] sm:$0xff]
    %v228 = vld [vmem:[#allocation8 + $0x160] sm:$0xff]
    %v229 = vld [vmem:[#allocation8 + $0x168] sm:$0xff]
    %v230 = vld [vmem:[#allocation8 + $0x170] sm:$0xff]
    %v231 = vld [vmem:[#allocation8 + $0x178] sm:$0xff]
    %v232 = vld [vmem:[#allocation8 + $0x180] sm:$0xff]
    %v233 = vld [vmem:[#allocation8 + $0x188] sm:$0xff]
    %v234 = vld [vmem:[#allocation8 + $0x190] sm:$0xff]
    %v235 = vld [vmem:[#allocation8 + $0x198] sm:$0xff]
    %v236 = vld [vmem:[#allocation8 + $0x1a0] sm:$0xff]
    %v237 = vld [vmem:[#allocation8 + $0x1a8] sm:$0xff]
    %v238 = vld [vmem:[#allocation8 + $0x1b0] sm:$0xff]
    %v239 = vld [vmem:[#allocation8 + $0x1b8] sm:$0xff]
    %v240 = vld [vmem:[#allocation8 + $0x1c0] sm:$0xff]
    %v241 = vld [vmem:[#allocation8 + $0x1c8] sm:$0xff]
    %v242 = vld [vmem:[#allocation8 + $0x1d0] sm:$0xff]
    %v243 = vld [vmem:[#allocation8 + $0x1d8] sm:$0xff]
    %v244 = vld [vmem:[#allocation8 + $0x1e0] sm:$0xff]
    %v245 = vld [vmem:[#allocation8 + $0x1e8] sm:$0xff]
    %v246 = vld [vmem:[#allocation8 + $0x1f0] sm:$0xff]
    %v247 = vld [vmem:[#allocation8 + $0x1f8] sm:$0xff]
    %v248 = vld [vmem:[%s4] sm:$0x3]
    %v250 = vperm.slane %v248, 0
    %v251 = vperm.slane %v248, 1
    %254 = vmatpush.msra.mxu0 %v214
    %255 = vmatpush.msra.mxu0 %v212
    %256 = vmatpush.msra.mxu0 %v210
    %257 = vmatpush.msra.mxu0 %v208
    %258 = vmatpush.msra.mxu0 %v206
    %259 = vmatpush.msra.mxu0 %v204
    %260 = vmatpush.msra.mxu0 %v202
    %261 = vmatpush.msra.mxu0 %v200
    %262 = vmatpush.msra.mxu0 %v198
    %263 = vmatpush.msra.mxu0 %v196
    %264 = vmatpush.msra.mxu0 %v194
    %265 = vmatpush.msra.mxu0 %v192
    %266 = vmatpush.msra.mxu0 %v190
    %267 = vmatpush.msra.mxu0 %v188
    %268 = vmatpush.msra.mxu0 %v186
    %269 = vmatpush.msra.mxu0 %v184
    %270 = vmatmul.f32.gmra.mxu0 %v182
    %v271 = vpop.f32.mrf.mxu0
    %v272 = vadd.f32 %v250, %v271
    %273 = vdwg.mxu0
    %274 = vmatpush.msra.mxu0 %v246
    %275 = vmatpush.msra.mxu0 %v244
    %276 = vmatpush.msra.mxu0 %v242
    %277 = vmatpush.msra.mxu0 %v240
    %278 = vmatpush.msra.mxu0 %v238
    %279 = vmatpush.msra.mxu0 %v236
    %280 = vmatpush.msra.mxu0 %v234
    %281 = vmatpush.msra.mxu0 %v232
    %282 = vmatpush.msra.mxu0 %v230
    %283 = vmatpush.msra.mxu0 %v228
    %284 = vmatpush.msra.mxu0 %v226
    %285 = vmatpush.msra.mxu0 %v224
    %286 = vmatpush.msra.mxu0 %v222
    %287 = vmatpush.msra.mxu0 %v220
    %288 = vmatpush.msra.mxu0 %v218
    %289 = vmatpush.msra.mxu0 %v216
    %290 = vmatmul.f32.gmra.mxu0 %v183
    %v291 = vpop.f32.mrf.mxu0
    %v292 = vadd.f32 %v272, %v291
    %293 = vdwg.mxu0
    %294 = vmatpush.msra.mxu0 %v215
    %295 = vmatpush.msra.mxu0 %v213
    %296 = vmatpush.msra.mxu0 %v211
    %297 = vmatpush.msra.mxu0 %v209
    %298 = vmatpush.msra.mxu0 %v207
    %299 = vmatpush.msra.mxu0 %v205
    %300 = vmatpush.msra.mxu0 %v203
    %301 = vmatpush.msra.mxu0 %v201
    %302 = vmatpush.msra.mxu0 %v199
    %303 = vmatpush.msra.mxu0 %v197
    %304 = vmatpush.msra.mxu0 %v195
    %305 = vmatpush.msra.mxu0 %v193
    %306 = vmatpush.msra.mxu0 %v191
    %307 = vmatpush.msra.mxu0 %v189
    %308 = vmatpush.msra.mxu0 %v187
    %309 = vmatpush.msra.mxu0 %v185
    %310 = vmatmul.f32.gmra.mxu0 %v182
    %v311 = vpop.f32.mrf.mxu0
    %v312 = vadd.f32 %v251, %v311
    %313 = vdwg.mxu0
    %314 = vmatpush.msra.mxu0 %v247
    %315 = vmatpush.msra.mxu0 %v245
    %316 = vmatpush.msra.mxu0 %v243
    %317 = vmatpush.msra.mxu0 %v241
    %318 = vmatpush.msra.mxu0 %v239
    %319 = vmatpush.msra.mxu0 %v237
    %320 = vmatpush.msra.mxu0 %v235
    %321 = vmatpush.msra.mxu0 %v233
    %322 = vmatpush.msra.mxu0 %v231
    %323 = vmatpush.msra.mxu0 %v229
    %324 = vmatpush.msra.mxu0 %v227
    %325 = vmatpush.msra.mxu0 %v225
    %326 = vmatpush.msra.mxu0 %v223
    %327 = vmatpush.msra.mxu0 %v221
    %328 = vmatpush.msra.mxu0 %v219
    %329 = vmatpush.msra.mxu0 %v217
    %330 = vmatmul.f32.gmra.mxu0 %v183
    %v331 = vpop.f32.mrf.mxu0
    %v332 = vadd.f32 %v312, %v331
    %333 = vdwg.mxu0
    %v334 = vtanh.pop %v292
    %v335 = vtanh.pop %v332
    %v336 = vld [vmem:[#allocation10] sm:$0xff]
    %v337 = vld [vmem:[#allocation10 + $0x8] sm:$0xff]
    %v338 = vld [vmem:[#allocation10 + $0x10] sm:$0xff]
    %v339 = vld [vmem:[#allocation10 + $0x18] sm:$0xff]
    %v340 = vld [vmem:[#allocation10 + $0x20] sm:$0xff]
    %v341 = vld [vmem:[#allocation10 + $0x28] sm:$0xff]
    %v342 = vld [vmem:[#allocation10 + $0x30] sm:$0xff]
    %v343 = vld [vmem:[#allocation10 + $0x38] sm:$0xff]
    %v344 = vld [vmem:[#allocation10 + $0x40] sm:$0xff]
    %v345 = vld [vmem:[#allocation10 + $0x48] sm:$0xff]
    %v346 = vld [vmem:[#allocation10 + $0x50] sm:$0xff]
    %v347 = vld [vmem:[#allocation10 + $0x58] sm:$0xff]
    %v348 = vld [vmem:[#allocation10 + $0x60] sm:$0xff]
    %v349 = vld [vmem:[#allocation10 + $0x68] sm:$0xff]
    %v350 = vld [vmem:[#allocation10 + $0x70] sm:$0xff]
    %v351 = vld [vmem:[#allocation10 + $0x78] sm:$0xff]
    %v352 = vld [vmem:[#allocation10 + $0x80] sm:$0xff]
    %v353 = vld [vmem:[#allocation10 + $0x88] sm:$0xff]
    %v354 = vld [vmem:[#allocation10 + $0x90] sm:$0xff]
    %v355 = vld [vmem:[#allocation10 + $0x98] sm:$0xff]
    %v356 = vld [vmem:[#allocation10 + $0xa0] sm:$0xff]
    %v357 = vld [vmem:[#allocation10 + $0xa8] sm:$0xff]
    %v358 = vld [vmem:[#allocation10 + $0xb0] sm:$0xff]
    %v359 = vld [vmem:[#allocation10 + $0xb8] sm:$0xff]
    %v360 = vld [vmem:[#allocation10 + $0xc0] sm:$0xff]
    %v361 = vld [vmem:[#allocation10 + $0xc8] sm:$0xff]
    %v362 = vld [vmem:[#allocation10 + $0xd0] sm:$0xff]
    %v363 = vld [vmem:[#allocation10 + $0xd8] sm:$0xff]
    %v364 = vld [vmem:[#allocation10 + $0xe0] sm:$0xff]
    %v365 = vld [vmem:[#allocation10 + $0xe8] sm:$0xff]
    %v366 = vld [vmem:[#allocation10 + $0xf0] sm:$0xff]
    %v367 = vld [vmem:[#allocation10 + $0xf8] sm:$0xff]
    %v368 = vld [vmem:[#allocation10 + $0x100] sm:$0xff]
    %v369 = vld [vmem:[#allocation10 + $0x108] sm:$0xff]
    %v370 = vld [vmem:[#allocation10 + $0x110] sm:$0xff]
    %v371 = vld [vmem:[#allocation10 + $0x118] sm:$0xff]
    %v372 = vld [vmem:[#allocation10 + $0x120] sm:$0xff]
    %v373 = vld [vmem:[#allocation10 + $0x128] sm:$0xff]
    %v374 = vld [vmem:[#allocation10 + $0x130] sm:$0xff]
    %v375 = vld [vmem:[#allocation10 + $0x138] sm:$0xff]
    %v376 = vld [vmem:[#allocation10 + $0x140] sm:$0xff]
    %v377 = vld [vmem:[#allocation10 + $0x148] sm:$0xff]
    %v378 = vld [vmem:[#allocation10 + $0x150] sm:$0xff]
    %v379 = vld [vmem:[#allocation10 + $0x158] sm:$0xff]
    %v380 = vld [vmem:[#allocation10 + $0x160] sm:$0xff]
    %v381 = vld [vmem:[#allocation10 + $0x168] sm:$0xff]
    %v382 = vld [vmem:[#allocation10 + $0x170] sm:$0xff]
    %v383 = vld [vmem:[#allocation10 + $0x178] sm:$0xff]
    %v384 = vld [vmem:[#allocation10 + $0x180] sm:$0xff]
    %v385 = vld [vmem:[#allocation10 + $0x188] sm:$0xff]
    %v386 = vld [vmem:[#allocation10 + $0x190] sm:$0xff]
    %v387 = vld [vmem:[#allocation10 + $0x198] sm:$0xff]
    %v388 = vld [vmem:[#allocation10 + $0x1a0] sm:$0xff]
    %v389 = vld [vmem:[#allocation10 + $0x1a8] sm:$0xff]
    %v390 = vld [vmem:[#allocation10 + $0x1b0] sm:$0xff]
    %v391 = vld [vmem:[#allocation10 + $0x1b8] sm:$0xff]
    %v392 = vld [vmem:[#allocation10 + $0x1c0] sm:$0xff]
    %v393 = vld [vmem:[#allocation10 + $0x1c8] sm:$0xff]
    %v394 = vld [vmem:[#allocation10 + $0x1d0] sm:$0xff]
    %v395 = vld [vmem:[#allocation10 + $0x1d8] sm:$0xff]
    %v396 = vld [vmem:[#allocation10 + $0x1e0] sm:$0xff]
    %v397 = vld [vmem:[#allocation10 + $0x1e8] sm:$0xff]
    %v398 = vld [vmem:[#allocation10 + $0x1f0] sm:$0xff]
    %v399 = vld [vmem:[#allocation10 + $0x1f8] sm:$0xff]
    %v400 = vld [vmem:[%s6] sm:$0x3]
    %v402 = vperm.slane %v400, 0
    %v403 = vperm.slane %v400, 1
    %406 = vmatpush.msra.mxu0 %v366
    %407 = vmatpush.msra.mxu0 %v364
    %408 = vmatpush.msra.mxu0 %v362
    %409 = vmatpush.msra.mxu0 %v360
    %410 = vmatpush.msra.mxu0 %v358
    %411 = vmatpush.msra.mxu0 %v356
    %412 = vmatpush.msra.mxu0 %v354
    %413 = vmatpush.msra.mxu0 %v352
    %414 = vmatpush.msra.mxu0 %v350
    %415 = vmatpush.msra.mxu0 %v348
    %416 = vmatpush.msra.mxu0 %v346
    %417 = vmatpush.msra.mxu0 %v344
    %418 = vmatpush.msra.mxu0 %v342
    %419 = vmatpush.msra.mxu0 %v340
    %420 = vmatpush.msra.mxu0 %v338
    %421 = vmatpush.msra.mxu0 %v336
    %422 = vmatmul.f32.gmra.mxu0 %v334
    %v423 = vpop.f32.mrf.mxu0
    %v424 = vadd.f32 %v402, %v423
    %425 = vdwg.mxu0
    %426 = vmatpush.msra.mxu0 %v398
    %427 = vmatpush.msra.mxu0 %v396
    %428 = vmatpush.msra.mxu0 %v394
    %429 = vmatpush.msra.mxu0 %v392
    %430 = vmatpush.msra.mxu0 %v390
    %431 = vmatpush.msra.mxu0 %v388
    %432 = vmatpush.msra.mxu0 %v386
    %433 = vmatpush.msra.mxu0 %v384
    %434 = vmatpush.msra.mxu0 %v382
    %435 = vmatpush.msra.mxu0 %v380
    %436 = vmatpush.msra.mxu0 %v378
    %437 = vmatpush.msra.mxu0 %v376
    %438 = vmatpush.msra.mxu0 %v374
    %439 = vmatpush.msra.mxu0 %v372
    %440 = vmatpush.msra.mxu0 %v370
    %441 = vmatpush.msra.mxu0 %v368
    %442 = vmatmul.f32.gmra.mxu0 %v335
    %v443 = vpop.f32.mrf.mxu0
    %v444 = vadd.f32 %v424, %v443
    %445 = vdwg.mxu0
    %446 = vmatpush.msra.mxu0 %v367
    %447 = vmatpush.msra.mxu0 %v365
    %448 = vmatpush.msra.mxu0 %v363
    %449 = vmatpush.msra.mxu0 %v361
    %450 = vmatpush.msra.mxu0 %v359
    %451 = vmatpush.msra.mxu0 %v357
    %452 = vmatpush.msra.mxu0 %v355
    %453 = vmatpush.msra.mxu0 %v353
    %454 = vmatpush.msra.mxu0 %v351
    %455 = vmatpush.msra.mxu0 %v349
    %456 = vmatpush.msra.mxu0 %v347
    %457 = vmatpush.msra.mxu0 %v345
    %458 = vmatpush.msra.mxu0 %v343
    %459 = vmatpush.msra.mxu0 %v341
    %460 = vmatpush.msra.mxu0 %v339
    %461 = vmatpush.msra.mxu0 %v337
    %462 = vmatmul.f32.gmra.mxu0 %v334
    %v463 = vpop.f32.mrf.mxu0
    %v464 = vadd.f32 %v403, %v463
    %465 = vdwg.mxu0
    %466 = vmatpush.msra.mxu0 %v399
    %467 = vmatpush.msra.mxu0 %v397
    %468 = vmatpush.msra.mxu0 %v395
    %469 = vmatpush.msra.mxu0 %v393
    %470 = vmatpush.msra.mxu0 %v391
    %471 = vmatpush.msra.mxu0 %v389
    %472 = vmatpush.msra.mxu0 %v387
    %473 = vmatpush.msra.mxu0 %v385
    %474 = vmatpush.msra.mxu0 %v383
    %475 = vmatpush.msra.mxu0 %v381
    %476 = vmatpush.msra.mxu0 %v379
    %477 = vmatpush.msra.mxu0 %v377
    %478 = vmatpush.msra.mxu0 %v375
    %479 = vmatpush.msra.mxu0 %v373
    %480 = vmatpush.msra.mxu0 %v371
    %481 = vmatpush.msra.mxu0 %v369
    %482 = vmatmul.f32.gmra.mxu0 %v335
    %v483 = vpop.f32.mrf.mxu0
    %v484 = vadd.f32 %v464, %v483
    %485 = vdwg.mxu0
    %v486 = vld [vmem:[#allocation11] sm:$0xff]
    %v487 = vld [vmem:[#allocation11 + $0x8] sm:$0xff]
    %v488 = vld [vmem:[#allocation11 + $0x10] sm:$0xff]
    %v489 = vld [vmem:[#allocation11 + $0x18] sm:$0xff]
    %v490 = vld [vmem:[#allocation11 + $0x20] sm:$0xff]
    %v491 = vld [vmem:[#allocation11 + $0x28] sm:$0xff]
    %v492 = vld [vmem:[#allocation11 + $0x30] sm:$0xff]
    %v493 = vld [vmem:[#allocation11 + $0x38] sm:$0xff]
    %v494 = vld [vmem:[#allocation11 + $0x40] sm:$0xff]
    %v495 = vld [vmem:[#allocation11 + $0x48] sm:$0xff]
    %v496 = vld [vmem:[#allocation11 + $0x50] sm:$0xff]
    %v497 = vld [vmem:[#allocation11 + $0x58] sm:$0xff]
    %v498 = vld [vmem:[#allocation11 + $0x60] sm:$0xff]
    %v499 = vld [vmem:[#allocation11 + $0x68] sm:$0xff]
    %v500 = vld [vmem:[#allocation11 + $0x70] sm:$0xff]
    %v501 = vld [vmem:[#allocation11 + $0x78] sm:$0xff]
    %v502 = vld [vmem:[#allocation11 + $0x80] sm:$0xff]
    %v503 = vld [vmem:[#allocation11 + $0x88] sm:$0xff]
    %v504 = vld [vmem:[#allocation11 + $0x90] sm:$0xff]
    %v505 = vld [vmem:[#allocation11 + $0x98] sm:$0xff]
    %v506 = vld [vmem:[#allocation11 + $0xa0] sm:$0xff]
    %v507 = vld [vmem:[#allocation11 + $0xa8] sm:$0xff]
    %v508 = vld [vmem:[#allocation11 + $0xb0] sm:$0xff]
    %v509 = vld [vmem:[#allocation11 + $0xb8] sm:$0xff]
    %v510 = vld [vmem:[#allocation11 + $0xc0] sm:$0xff]
    %v511 = vld [vmem:[#allocation11 + $0xc8] sm:$0xff]
    %v512 = vld [vmem:[#allocation11 + $0xd0] sm:$0xff]
    %v513 = vld [vmem:[#allocation11 + $0xd8] sm:$0xff]
    %v514 = vld [vmem:[#allocation11 + $0xe0] sm:$0xff]
    %v515 = vld [vmem:[#allocation11 + $0xe8] sm:$0xff]
    %v516 = vld [vmem:[#allocation11 + $0xf0] sm:$0xff]
    %v517 = vld [vmem:[#allocation11 + $0xf8] sm:$0xff]
    %v518 = vld [vmem:[%s8] sm:$0x1]
    %v520 = vperm.slane %v518, 0
    %522 = vmatpush.msra.mxu0 %v501
    %523 = vmatpush.msra.mxu0 %v500
    %524 = vmatpush.msra.mxu0 %v499
    %525 = vmatpush.msra.mxu0 %v498
    %526 = vmatpush.msra.mxu0 %v497
    %527 = vmatpush.msra.mxu0 %v496
    %528 = vmatpush.msra.mxu0 %v495
    %529 = vmatpush.msra.mxu0 %v494
    %530 = vmatpush.msra.mxu0 %v493
    %531 = vmatpush.msra.mxu0 %v492
    %532 = vmatpush.msra.mxu0 %v491
    %533 = vmatpush.msra.mxu0 %v490
    %534 = vmatpush.msra.mxu0 %v489
    %535 = vmatpush.msra.mxu0 %v488
    %536 = vmatpush.msra.mxu0 %v487
    %537 = vmatpush.msra.mxu0 %v486
    %538 = vmatmul.f32.gmra.mxu0 %v444
    %v539 = vpop.f32.mrf.mxu0
    %v540 = vadd.f32 %v520, %v539
    %541 = vdwg.mxu0
    %542 = vmatpush.msra.mxu0 %v517
    %543 = vmatpush.msra.mxu0 %v516
    %544 = vmatpush.msra.mxu0 %v515
    %545 = vmatpush.msra.mxu0 %v514
    %546 = vmatpush.msra.mxu0 %v513
    %547 = vmatpush.msra.mxu0 %v512
    %548 = vmatpush.msra.mxu0 %v511
    %549 = vmatpush.msra.mxu0 %v510
    %550 = vmatpush.msra.mxu0 %v509
    %551 = vmatpush.msra.mxu0 %v508
    %552 = vmatpush.msra.mxu0 %v507
    %553 = vmatpush.msra.mxu0 %v506
    %554 = vmatpush.msra.mxu0 %v505
    %555 = vmatpush.msra.mxu0 %v504
    %556 = vmatpush.msra.mxu0 %v503
    %557 = vmatpush.msra.mxu0 %v502
    %558 = vmatmul.f32.gmra.mxu0 %v484
    %v559 = vpop.f32.mrf.mxu0
    %v560 = vadd.f32 %v540, %v559
    %561 = vdwg.mxu0
    %562 = vst [vmem:[#allocation13] sm:$0xff] %v560
    // Predicated region
    $region62: #{tpu_custom_call.1} parent=1 // pred_check
      _
    $region63: #{tpu_custom_call.1} parent=1 // pred_check_branch
      %564 = sbr.rel (0) target = $region65
    $region64: #{tpu_custom_call.1} parent=1 // pred_region
      %566 = vsyncadd [#allocation4], 0
      %s568 = sshll.u32 [#allocation13], 4
      %s569 = int_to_ptr.vmem [resolvable:$true] %s568
      %s570 = sshll.u32 %s9, 4
      %s571 = int_to_ptr.hbm [resolvable:$true] %s570
      %573 = dma.vmem_to_hbm [thread:$0]  %s569, 128, %s571, [#allocation4]
    $region65: #{tpu_custom_call.1} parent=1 // pred_fallthru
      _
    // Predicated region
    $region66: #{tpu_custom_call.1} parent=1 // pred_check
      _
    $region67: #{tpu_custom_call.1} parent=1 // pred_check_branch
      %575 = sbr.rel (0) target = $region69
    $region68: #{tpu_custom_call.1} parent=1 // pred_region
      %577 = dma.done [#allocation4], 128
    $region69: #{tpu_custom_call.1} parent=1 // pred_fallthru
      _
    %578 = vsyncpa [#allocation3], 1
    %579 = vsyncpa [#allocation6], 1
    %580 = vsyncpa [#allocation9], 1
    %581 = vsyncpa [#allocation12], 1
    %582 = vsyncpa [#allocation4], 1

// kernel: tpu_custom_call.1
$region0: #{tpu_custom_call.1}
  #allocation0 [shape = 'u32[]', space=smem, size = 0x4, offset = 0x4, fixed_abs, tag = 'smem constant byte address 0x4 - core index']
  #allocation1 [shape = 'u32[72,128]{1,0:T(1,128)}', space=vmem, size = 0x9000, scoped, tag = 'internal scratch']
  %s0 = inlined_call_operand.hbm [shape: f32[8,32], index: 0, kind: input, shape index: {}]
  %s1 = inlined_call_operand.hbm [shape: f32[32,256], index: 1, kind: input, shape index: {}]
  %s2 = inlined_call_operand.hbm [shape: f32[1,256], index: 2, kind: input, shape index: {}]
  %s3 = inlined_call_operand.hbm [shape: f32[256,256], index: 3, kind: input, shape index: {}]
  %s4 = inlined_call_operand.vmem [shape: f32[1,256], index: 4, kind: input, shape index: {}]
  %s5 = inlined_call_operand.hbm [shape: f32[256,256], index: 5, kind: input, shape index: {}]
  %s6 = inlined_call_operand.vmem [shape: f32[1,256], index: 6, kind: input, shape index: {}]
  %s7 = inlined_call_operand.hbm [shape: f32[256,128], index: 7, kind: input, shape index: {}]
  %s8 = inlined_call_operand.vmem [shape: f32[1,128], index: 8, kind: input, shape index: {}]
  %s9 = inlined_call_operand.hbm [shape: f32[8,128], index: 9, kind: output, shape index: {}]
  %s10 = sld [smem:[#allocation0]]
  $region70: #{tpu_custom_call.1} parent=0
    _
  %s12 = ssub.s32 1, %s10
  %s13 = scalar_select 0, %s12, %s10
  $region1: #{tpu_custom_call.1} parent=0
    #allocation2 [shape = 'u8[4096]{0}', space=vmem, size = 0x1000, scoped, tag = 'input window, operand 0, single buffered']
    #allocation3 [shape = 's32[1]{0}', space=sflag, size = 0x4, scoped, tag = 'scoped memory for tpu_custom_call.1']
    #allocation4 [shape = 's32[1]{0}', space=sflag, size = 0x4, scoped, tag = 'scoped memory for tpu_custom_call.1']
    #allocation5 [shape = 'u8[32768]{0}', space=vmem, size = 0x8000, scoped, tag = 'input window, operand 1, single buffered']
    #allocation6 [shape = 's32[1]{0}', space=sflag, size = 0x4, scoped, tag = 'scoped memory for tpu_custom_call.1']
    #allocation7 [shape = 'u8[1024]{0}', space=vmem, size = 0x400, scoped, tag = 'input window, operand 2, single buffered']
    #allocation8 [shape = 'u8[262144]{0}', space=vmem, size = 0x40000, scoped, tag = 'input window, operand 3, single buffered']
    #allocation9 [shape = 's32[1]{0}', space=sflag, size = 0x4, scoped, tag = 'scoped memory for tpu_custom_call.1']
    #allocation10 [shape = 'u8[262144]{0}', space=vmem, size = 0x40000, scoped, tag = 'input window, operand 5, single buffered']
    #allocation11 [shape = 'u8[131072]{0}', space=vmem, size = 0x20000, scoped, tag = 'input window, operand 7, single buffered']
    #allocation12 [shape = 's32[1]{0}', space=sflag, size = 0x4, scoped, tag = 'scoped memory for tpu_custom_call.1']
    #allocation13 [shape = 'u8[4096]{0}', space=vmem, size = 0x1000, scoped, tag = 'output window, operand 0, single buffered']
    %14 = vsyncpa [#allocation3], 0
    %15 = vsyncpa [#allocation6], 0
    %16 = vsyncpa [#allocation9], 0
    %17 = vsyncpa [#allocation12], 0
    %18 = vsyncpa [#allocation4], 0
    // Predicated region
    $region2: #{tpu_custom_call.1} parent=1 // pred_check
      _
    $region3: #{tpu_custom_call.1} parent=1 // pred_check_branch
      %20 = sbr.rel (0) target = $region5
    $region4: #{tpu_custom_call.1} parent=1 // pred_region
      %22 = vsyncadd [#allocation3], 0
      %s24 = sshll.u32 %s0, 4
      %s25 = int_to_ptr.hbm [resolvable:$true] %s24
      %s26 = sshll.u32 [#allocation2], 4
      %s27 = int_to_ptr.vmem [resolvable:$true] %s26
      %29 = dma.hbm_to_vmem [thread:$0]  %s25, 128, %s27, [#allocation3]
    $region5: #{tpu_custom_call.1} parent=1 // pred_fallthru
      _
    // Predicated region
    $region6: #{tpu_custom_call.1} parent=1 // pred_check
      _
    $region7: #{tpu_custom_call.1} parent=1 // pred_check_branch
      %31 = sbr.rel (0) target = $region9
    $region8: #{tpu_custom_call.1} parent=1 // pred_region
      %33 = vsyncadd [#allocation6], 0
      %s34 = sshll.u32 %s1, 4
      %s35 = int_to_ptr.hbm [resolvable:$true] %s34
      %s36 = sshll.u32 [#allocation5], 4
      %s37 = int_to_ptr.vmem [resolvable:$true] %s36
      %42 = dma.hbm_to_vmem [thread:$0]  %s35, 1024, %s37, [#allocation6], 256, 256, 16
    $region9: #{tpu_custom_call.1} parent=1 // pred_fallthru
      _
    // Predicated region
    $region10: #{tpu_custom_call.1} parent=1 // pred_check
      _
    $region11: #{tpu_custom_call.1} parent=1 // pred_check_branch
      %44 = sbr.rel (0) target = $region13
    $region12: #{tpu_custom_call.1} parent=1 // pred_region
      %46 = vsyncadd [#allocation6], 0
      %s48 = sshll.u32 %s2, 4
      %s49 = int_to_ptr.hbm [resolvable:$true] %s48
      %s50 = sshll.u32 [#allocation7], 4
      %s51 = int_to_ptr.vmem [resolvable:$true] %s50
      %53 = dma.hbm_to_vmem [thread:$0]  %s49, 32, %s51, [#allocation6]
    $region13: #{tpu_custom_call.1} parent=1 // pred_fallthru
      _
    // Predicated region
    $region14: #{tpu_custom_call.1} parent=1 // pred_check
      _
    $region15: #{tpu_custom_call.1} parent=1 // pred_check_branch
      %55 = sbr.rel (0) target = $region17
    $region16: #{tpu_custom_call.1} parent=1 // pred_region
      %57 = vsyncadd [#allocation9], 0
      %s58 = sshll.u32 %s3, 4
      %s59 = int_to_ptr.hbm [resolvable:$true] %s58
      %s60 = sshll.u32 [#allocation8], 4
      %s61 = int_to_ptr.vmem [resolvable:$true] %s60
      %66 = dma.hbm_to_vmem [thread:$0]  %s59, 8192, %s61, [#allocation9], 256, 256, 16
    $region17: #{tpu_custom_call.1} parent=1 // pred_fallthru
      _
    // Predicated region
    $region18: #{tpu_custom_call.1} parent=1 // pred_check
      _
    $region19: #{tpu_custom_call.1} parent=1 // pred_check_branch
      %68 = sbr.rel (0) target = $region21
    $region20: #{tpu_custom_call.1} parent=1 // pred_region
      _
    $region21: #{tpu_custom_call.1} parent=1 // pred_fallthru
      _
    // Predicated region
    $region22: #{tpu_custom_call.1} parent=1 // pred_check
      _
    $region23: #{tpu_custom_call.1} parent=1 // pred_check_branch
      %70 = sbr.rel (0) target = $region25
    $region24: #{tpu_custom_call.1} parent=1 // pred_region
      %72 = vsyncadd [#allocation9], 0
      %s73 = sshll.u32 %s5, 4
      %s74 = int_to_ptr.hbm [resolvable:$true] %s73
      %s75 = sshll.u32 [#allocation10], 4
      %s76 = int_to_ptr.vmem [resolvable:$true] %s75
      %81 = dma.hbm_to_vmem [thread:$0]  %s74, 8192, %s76, [#allocation9], 256, 256, 16
    $region25: #{tpu_custom_call.1} parent=1 // pred_fallthru
      _
    // Predicated region
    $region26: #{tpu_custom_call.1} parent=1 // pred_check
      _
    $region27: #{tpu_custom_call.1} parent=1 // pred_check_branch
      %83 = sbr.rel (0) target = $region29
    $region28: #{tpu_custom_call.1} parent=1 // pred_region
      _
    $region29: #{tpu_custom_call.1} parent=1 // pred_fallthru
      _
    // Predicated region
    $region30: #{tpu_custom_call.1} parent=1 // pred_check
      _
    $region31: #{tpu_custom_call.1} parent=1 // pred_check_branch
      %85 = sbr.rel (0) target = $region33
    $region32: #{tpu_custom_call.1} parent=1 // pred_region
      %87 = vsyncadd [#allocation12], 0
      %s88 = sshll.u32 %s7, 4
      %s89 = int_to_ptr.hbm [resolvable:$true] %s88
      %s90 = sshll.u32 [#allocation11], 4
      %s91 = int_to_ptr.vmem [resolvable:$true] %s90
      %96 = dma.hbm_to_vmem [thread:$0]  %s89, 4096, %s91, [#allocation12], 128, 128, 8
    $region33: #{tpu_custom_call.1} parent=1 // pred_fallthru
      _
    // Predicated region
    $region34: #{tpu_custom_call.1} parent=1 // pred_check
      _
    $region35: #{tpu_custom_call.1} parent=1 // pred_check_branch
      %98 = sbr.rel (0) target = $region37
    $region36: #{tpu_custom_call.1} parent=1 // pred_region
      _
    $region37: #{tpu_custom_call.1} parent=1 // pred_fallthru
      _
    // Predicated region
    $region38: #{tpu_custom_call.1} parent=1 // pred_check
      _
    $region39: #{tpu_custom_call.1} parent=1 // pred_check_branch
      %100 = sbr.rel (0) target = $region41
    $region40: #{tpu_custom_call.1} parent=1 // pred_region
      %102 = dma.done [#allocation3], 128
    $region41: #{tpu_custom_call.1} parent=1 // pred_fallthru
      _
    // Predicated region
    $region42: #{tpu_custom_call.1} parent=1 // pred_check
      _
    $region43: #{tpu_custom_call.1} parent=1 // pred_check_branch
      %104 = sbr.rel (0) target = $region45
    $region44: #{tpu_custom_call.1} parent=1 // pred_region
      %106 = dma.done [#allocation6], 1024
    $region45: #{tpu_custom_call.1} parent=1 // pred_fallthru
      _
    // Predicated region
    $region46: #{tpu_custom_call.1} parent=1 // pred_check
      _
    $region47: #{tpu_custom_call.1} parent=1 // pred_check_branch
      %108 = sbr.rel (0) target = $region49
    $region48: #{tpu_custom_call.1} parent=1 // pred_region
      %110 = dma.done [#allocation6], 32
    $region49: #{tpu_custom_call.1} parent=1 // pred_fallthru
      _
    // Predicated region
    $region50: #{tpu_custom_call.1} parent=1 // pred_check
      _
    $region51: #{tpu_custom_call.1} parent=1 // pred_check_branch
      %112 = sbr.rel (0) target = $region53
    $region52: #{tpu_custom_call.1} parent=1 // pred_region
      %114 = dma.done [#allocation9], 8192
    $region53: #{tpu_custom_call.1} parent=1 // pred_fallthru
      _
    // Predicated region
    $region54: #{tpu_custom_call.1} parent=1 // pred_check
      _
    $region55: #{tpu_custom_call.1} parent=1 // pred_check_branch
      %116 = sbr.rel (0) target = $region57
    $region56: #{tpu_custom_call.1} parent=1 // pred_region
      %118 = dma.done [#allocation9], 8192
    $region57: #{tpu_custom_call.1} parent=1 // pred_fallthru
      _
    // Predicated region
    $region58: #{tpu_custom_call.1} parent=1 // pred_check
      _
    $region59: #{tpu_custom_call.1} parent=1 // pred_check_branch
      %120 = sbr.rel (0) target = $region61
    $region60: #{tpu_custom_call.1} parent=1 // pred_region
      %122 = dma.done [#allocation12], 4096
    $region61: #{tpu_custom_call.1} parent=1 // pred_fallthru
      _
    %v123 = vld [vmem:[#allocation2] sm:$0xff]
    %v124 = vld [vmem:[#allocation5] sm:$0xff]
    %v125 = vld [vmem:[#allocation5 + $0x8] sm:$0xff]
    %v126 = vld [vmem:[#allocation5 + $0x10] sm:$0xff]
    %v127 = vld [vmem:[#allocation5 + $0x18] sm:$0xff]
    %v128 = vld [vmem:[#allocation5 + $0x20] sm:$0xff]
    %v129 = vld [vmem:[#allocation5 + $0x28] sm:$0xff]
    %v130 = vld [vmem:[#allocation5 + $0x30] sm:$0xff]
    %v131 = vld [vmem:[#allocation5 + $0x38] sm:$0xff]
    %v132 = vld [vmem:[#allocation7] sm:$0x3]
    %v134 = vperm.slane %v132, 0
    %v135 = vperm.slane %v132, 1
    %vm138 = vcmask 261120
    %v140 = vsel %vm138, %v123, 0
    %142 = vmatpush.msra.mxu0 0.0
    %143 = vmatpush.msra.mxu0 0.0
    %144 = vmatpush.msra.mxu0 0.0
    %145 = vmatpush.msra.mxu0 0.0
    %146 = vmatpush.msra.mxu0 0.0
    %147 = vmatpush.msra.mxu0 0.0
    %148 = vmatpush.msra.mxu0 0.0
    %149 = vmatpush.msra.mxu0 0.0
    %150 = vmatpush.msra.mxu0 0.0
    %151 = vmatpush.msra.mxu0 0.0
    %152 = vmatpush.msra.mxu0 0.0
    %153 = vmatpush.msra.mxu0 0.0
    %154 = vmatpush.msra.mxu0 %v130
    %155 = vmatpush.msra.mxu0 %v128
    %156 = vmatpush.msra.mxu0 %v126
    %157 = vmatpush.msra.mxu0 %v124
    %158 = vmatmul.f32.gmra.mxu0 %v140
    %v159 = vpop.f32.mrf.mxu0
    %v160 = vadd.f32 %v134, %v159
    %161 = vdwg.mxu0
    %162 = vmatpush.msra.mxu0 0.0
    %163 = vmatpush.msra.mxu0 0.0
    %164 = vmatpush.msra.mxu0 0.0
    %165 = vmatpush.msra.mxu0 0.0
    %166 = vmatpush.msra.mxu0 0.0
    %167 = vmatpush.msra.mxu0 0.0
    %168 = vmatpush.msra.mxu0 0.0
    %169 = vmatpush.msra.mxu0 0.0
    %170 = vmatpush.msra.mxu0 0.0
    %171 = vmatpush.msra.mxu0 0.0
    %172 = vmatpush.msra.mxu0 0.0
    %173 = vmatpush.msra.mxu0 0.0
    %174 = vmatpush.msra.mxu0 %v131
    %175 = vmatpush.msra.mxu0 %v129
    %176 = vmatpush.msra.mxu0 %v127
    %177 = vmatpush.msra.mxu0 %v125
    %178 = vmatmul.f32.gmra.mxu0 %v140
    %v179 = vpop.f32.mrf.mxu0
    %v180 = vadd.f32 %v135, %v179
    %181 = vdwg.mxu0
    %v182 = vtanh.pop %v160
    %v183 = vtanh.pop %v180
    %v184 = vld [vmem:[#allocation8] sm:$0xff]
    %v185 = vld [vmem:[#allocation8 + $0x8] sm:$0xff]
    %v186 = vld [vmem:[#allocation8 + $0x10] sm:$0xff]
    %v187 = vld [vmem:[#allocation8 + $0x18] sm:$0xff]
    %v188 = vld [vmem:[#allocation8 + $0x20] sm:$0xff]
    %v189 = vld [vmem:[#allocation8 + $0x28] sm:$0xff]
    %v190 = vld [vmem:[#allocation8 + $0x30] sm:$0xff]
    %v191 = vld [vmem:[#allocation8 + $0x38] sm:$0xff]
    %v192 = vld [vmem:[#allocation8 + $0x40] sm:$0xff]
    %v193 = vld [vmem:[#allocation8 + $0x48] sm:$0xff]
    %v194 = vld [vmem:[#allocation8 + $0x50] sm:$0xff]
    %v195 = vld [vmem:[#allocation8 + $0x58] sm:$0xff]
    %v196 = vld [vmem:[#allocation8 + $0x60] sm:$0xff]
    %v197 = vld [vmem:[#allocation8 + $0x68] sm:$0xff]
    %v198 = vld [vmem:[#allocation8 + $0x70] sm:$0xff]
    %v199 = vld [vmem:[#allocation8 + $0x78] sm:$0xff]
    %v200 = vld [vmem:[#allocation8 + $0x80] sm:$0xff]
    %v201 = vld [vmem:[#allocation8 + $0x88] sm:$0xff]
    %v202 = vld [vmem:[#allocation8 + $0x90] sm:$0xff]
    %v203 = vld [vmem:[#allocation8 + $0x98] sm:$0xff]
    %v204 = vld [vmem:[#allocation8 + $0xa0] sm:$0xff]
    %v205 = vld [vmem:[#allocation8 + $0xa8] sm:$0xff]
    %v206 = vld [vmem:[#allocation8 + $0xb0] sm:$0xff]
    %v207 = vld [vmem:[#allocation8 + $0xb8] sm:$0xff]
    %v208 = vld [vmem:[#allocation8 + $0xc0] sm:$0xff]
    %v209 = vld [vmem:[#allocation8 + $0xc8] sm:$0xff]
    %v210 = vld [vmem:[#allocation8 + $0xd0] sm:$0xff]
    %v211 = vld [vmem:[#allocation8 + $0xd8] sm:$0xff]
    %v212 = vld [vmem:[#allocation8 + $0xe0] sm:$0xff]
    %v213 = vld [vmem:[#allocation8 + $0xe8] sm:$0xff]
    %v214 = vld [vmem:[#allocation8 + $0xf0] sm:$0xff]
    %v215 = vld [vmem:[#allocation8 + $0xf8] sm:$0xff]
    %v216 = vld [vmem:[#allocation8 + $0x100] sm:$0xff]
    %v217 = vld [vmem:[#allocation8 + $0x108] sm:$0xff]
    %v218 = vld [vmem:[#allocation8 + $0x110] sm:$0xff]
    %v219 = vld [vmem:[#allocation8 + $0x118] sm:$0xff]
    %v220 = vld [vmem:[#allocation8 + $0x120] sm:$0xff]
    %v221 = vld [vmem:[#allocation8 + $0x128] sm:$0xff]
    %v222 = vld [vmem:[#allocation8 + $0x130] sm:$0xff]
    %v223 = vld [vmem:[#allocation8 + $0x138] sm:$0xff]
    %v224 = vld [vmem:[#allocation8 + $0x140] sm:$0xff]
    %v225 = vld [vmem:[#allocation8 + $0x148] sm:$0xff]
    %v226 = vld [vmem:[#allocation8 + $0x150] sm:$0xff]
    %v227 = vld [vmem:[#allocation8 + $0x158] sm:$0xff]
    %v228 = vld [vmem:[#allocation8 + $0x160] sm:$0xff]
    %v229 = vld [vmem:[#allocation8 + $0x168] sm:$0xff]
    %v230 = vld [vmem:[#allocation8 + $0x170] sm:$0xff]
    %v231 = vld [vmem:[#allocation8 + $0x178] sm:$0xff]
    %v232 = vld [vmem:[#allocation8 + $0x180] sm:$0xff]
    %v233 = vld [vmem:[#allocation8 + $0x188] sm:$0xff]
    %v234 = vld [vmem:[#allocation8 + $0x190] sm:$0xff]
    %v235 = vld [vmem:[#allocation8 + $0x198] sm:$0xff]
    %v236 = vld [vmem:[#allocation8 + $0x1a0] sm:$0xff]
    %v237 = vld [vmem:[#allocation8 + $0x1a8] sm:$0xff]
    %v238 = vld [vmem:[#allocation8 + $0x1b0] sm:$0xff]
    %v239 = vld [vmem:[#allocation8 + $0x1b8] sm:$0xff]
    %v240 = vld [vmem:[#allocation8 + $0x1c0] sm:$0xff]
    %v241 = vld [vmem:[#allocation8 + $0x1c8] sm:$0xff]
    %v242 = vld [vmem:[#allocation8 + $0x1d0] sm:$0xff]
    %v243 = vld [vmem:[#allocation8 + $0x1d8] sm:$0xff]
    %v244 = vld [vmem:[#allocation8 + $0x1e0] sm:$0xff]
    %v245 = vld [vmem:[#allocation8 + $0x1e8] sm:$0xff]
    %v246 = vld [vmem:[#allocation8 + $0x1f0] sm:$0xff]
    %v247 = vld [vmem:[#allocation8 + $0x1f8] sm:$0xff]
    %v248 = vld [vmem:[%s4] sm:$0x3]
    %v250 = vperm.slane %v248, 0
    %v251 = vperm.slane %v248, 1
    %254 = vmatpush.msra.mxu0 %v214
    %255 = vmatpush.msra.mxu0 %v212
    %256 = vmatpush.msra.mxu0 %v210
    %257 = vmatpush.msra.mxu0 %v208
    %258 = vmatpush.msra.mxu0 %v206
    %259 = vmatpush.msra.mxu0 %v204
    %260 = vmatpush.msra.mxu0 %v202
    %261 = vmatpush.msra.mxu0 %v200
    %262 = vmatpush.msra.mxu0 %v198
    %263 = vmatpush.msra.mxu0 %v196
    %264 = vmatpush.msra.mxu0 %v194
    %265 = vmatpush.msra.mxu0 %v192
    %266 = vmatpush.msra.mxu0 %v190
    %267 = vmatpush.msra.mxu0 %v188
    %268 = vmatpush.msra.mxu0 %v186
    %269 = vmatpush.msra.mxu0 %v184
    %270 = vmatmul.f32.gmra.mxu0 %v182
    %v271 = vpop.f32.mrf.mxu0
    %v272 = vadd.f32 %v250, %v271
    %273 = vdwg.mxu0
    %274 = vmatpush.msra.mxu0 %v246
    %275 = vmatpush.msra.mxu0 %v244
    %276 = vmatpush.msra.mxu0 %v242
    %277 = vmatpush.msra.mxu0 %v240
    %278 = vmatpush.msra.mxu0 %v238
    %279 = vmatpush.msra.mxu0 %v236
    %280 = vmatpush.msra.mxu0 %v234
    %281 = vmatpush.msra.mxu0 %v232
    %282 = vmatpush.msra.mxu0 %v230
    %283 = vmatpush.msra.mxu0 %v228
    %284 = vmatpush.msra.mxu0 %v226
    %285 = vmatpush.msra.mxu0 %v224
    %286 = vmatpush.msra.mxu0 %v222
    %287 = vmatpush.msra.mxu0 %v220
    %288 = vmatpush.msra.mxu0 %v218
    %289 = vmatpush.msra.mxu0 %v216
    %290 = vmatmul.f32.gmra.mxu0 %v183
    %v291 = vpop.f32.mrf.mxu0
    %v292 = vadd.f32 %v272, %v291
    %293 = vdwg.mxu0
    %294 = vmatpush.msra.mxu0 %v215
    %295 = vmatpush.msra.mxu0 %v213
    %296 = vmatpush.msra.mxu0 %v211
    %297 = vmatpush.msra.mxu0 %v209
    %298 = vmatpush.msra.mxu0 %v207
    %299 = vmatpush.msra.mxu0 %v205
    %300 = vmatpush.msra.mxu0 %v203
    %301 = vmatpush.msra.mxu0 %v201
    %302 = vmatpush.msra.mxu0 %v199
    %303 = vmatpush.msra.mxu0 %v197
    %304 = vmatpush.msra.mxu0 %v195
    %305 = vmatpush.msra.mxu0 %v193
    %306 = vmatpush.msra.mxu0 %v191
    %307 = vmatpush.msra.mxu0 %v189
    %308 = vmatpush.msra.mxu0 %v187
    %309 = vmatpush.msra.mxu0 %v185
    %310 = vmatmul.f32.gmra.mxu0 %v182
    %v311 = vpop.f32.mrf.mxu0
    %v312 = vadd.f32 %v251, %v311
    %313 = vdwg.mxu0
    %314 = vmatpush.msra.mxu0 %v247
    %315 = vmatpush.msra.mxu0 %v245
    %316 = vmatpush.msra.mxu0 %v243
    %317 = vmatpush.msra.mxu0 %v241
    %318 = vmatpush.msra.mxu0 %v239
    %319 = vmatpush.msra.mxu0 %v237
    %320 = vmatpush.msra.mxu0 %v235
    %321 = vmatpush.msra.mxu0 %v233
    %322 = vmatpush.msra.mxu0 %v231
    %323 = vmatpush.msra.mxu0 %v229
    %324 = vmatpush.msra.mxu0 %v227
    %325 = vmatpush.msra.mxu0 %v225
    %326 = vmatpush.msra.mxu0 %v223
    %327 = vmatpush.msra.mxu0 %v221
    %328 = vmatpush.msra.mxu0 %v219
    %329 = vmatpush.msra.mxu0 %v217
    %330 = vmatmul.f32.gmra.mxu0 %v183
    %v331 = vpop.f32.mrf.mxu0
    %v332 = vadd.f32 %v312, %v331
    %333 = vdwg.mxu0
    %v334 = vtanh.pop %v292
    %v335 = vtanh.pop %v332
    %v336 = vld [vmem:[#allocation10] sm:$0xff]
    %v337 = vld [vmem:[#allocation10 + $0x8] sm:$0xff]
    %v338 = vld [vmem:[#allocation10 + $0x10] sm:$0xff]
    %v339 = vld [vmem:[#allocation10 + $0x18] sm:$0xff]
    %v340 = vld [vmem:[#allocation10 + $0x20] sm:$0xff]
    %v341 = vld [vmem:[#allocation10 + $0x28] sm:$0xff]
    %v342 = vld [vmem:[#allocation10 + $0x30] sm:$0xff]
    %v343 = vld [vmem:[#allocation10 + $0x38] sm:$0xff]
    %v344 = vld [vmem:[#allocation10 + $0x40] sm:$0xff]
    %v345 = vld [vmem:[#allocation10 + $0x48] sm:$0xff]
    %v346 = vld [vmem:[#allocation10 + $0x50] sm:$0xff]
    %v347 = vld [vmem:[#allocation10 + $0x58] sm:$0xff]
    %v348 = vld [vmem:[#allocation10 + $0x60] sm:$0xff]
    %v349 = vld [vmem:[#allocation10 + $0x68] sm:$0xff]
    %v350 = vld [vmem:[#allocation10 + $0x70] sm:$0xff]
    %v351 = vld [vmem:[#allocation10 + $0x78] sm:$0xff]
    %v352 = vld [vmem:[#allocation10 + $0x80] sm:$0xff]
    %v353 = vld [vmem:[#allocation10 + $0x88] sm:$0xff]
    %v354 = vld [vmem:[#allocation10 + $0x90] sm:$0xff]
    %v355 = vld [vmem:[#allocation10 + $0x98] sm:$0xff]
    %v356 = vld [vmem:[#allocation10 + $0xa0] sm:$0xff]
    %v357 = vld [vmem:[#allocation10 + $0xa8] sm:$0xff]
    %v358 = vld [vmem:[#allocation10 + $0xb0] sm:$0xff]
    %v359 = vld [vmem:[#allocation10 + $0xb8] sm:$0xff]
    %v360 = vld [vmem:[#allocation10 + $0xc0] sm:$0xff]
    %v361 = vld [vmem:[#allocation10 + $0xc8] sm:$0xff]
    %v362 = vld [vmem:[#allocation10 + $0xd0] sm:$0xff]
    %v363 = vld [vmem:[#allocation10 + $0xd8] sm:$0xff]
    %v364 = vld [vmem:[#allocation10 + $0xe0] sm:$0xff]
    %v365 = vld [vmem:[#allocation10 + $0xe8] sm:$0xff]
    %v366 = vld [vmem:[#allocation10 + $0xf0] sm:$0xff]
    %v367 = vld [vmem:[#allocation10 + $0xf8] sm:$0xff]
    %v368 = vld [vmem:[#allocation10 + $0x100] sm:$0xff]
    %v369 = vld [vmem:[#allocation10 + $0x108] sm:$0xff]
    %v370 = vld [vmem:[#allocation10 + $0x110] sm:$0xff]
    %v371 = vld [vmem:[#allocation10 + $0x118] sm:$0xff]
    %v372 = vld [vmem:[#allocation10 + $0x120] sm:$0xff]
    %v373 = vld [vmem:[#allocation10 + $0x128] sm:$0xff]
    %v374 = vld [vmem:[#allocation10 + $0x130] sm:$0xff]
    %v375 = vld [vmem:[#allocation10 + $0x138] sm:$0xff]
    %v376 = vld [vmem:[#allocation10 + $0x140] sm:$0xff]
    %v377 = vld [vmem:[#allocation10 + $0x148] sm:$0xff]
    %v378 = vld [vmem:[#allocation10 + $0x150] sm:$0xff]
    %v379 = vld [vmem:[#allocation10 + $0x158] sm:$0xff]
    %v380 = vld [vmem:[#allocation10 + $0x160] sm:$0xff]
    %v381 = vld [vmem:[#allocation10 + $0x168] sm:$0xff]
    %v382 = vld [vmem:[#allocation10 + $0x170] sm:$0xff]
    %v383 = vld [vmem:[#allocation10 + $0x178] sm:$0xff]
    %v384 = vld [vmem:[#allocation10 + $0x180] sm:$0xff]
    %v385 = vld [vmem:[#allocation10 + $0x188] sm:$0xff]
    %v386 = vld [vmem:[#allocation10 + $0x190] sm:$0xff]
    %v387 = vld [vmem:[#allocation10 + $0x198] sm:$0xff]
    %v388 = vld [vmem:[#allocation10 + $0x1a0] sm:$0xff]
    %v389 = vld [vmem:[#allocation10 + $0x1a8] sm:$0xff]
    %v390 = vld [vmem:[#allocation10 + $0x1b0] sm:$0xff]
    %v391 = vld [vmem:[#allocation10 + $0x1b8] sm:$0xff]
    %v392 = vld [vmem:[#allocation10 + $0x1c0] sm:$0xff]
    %v393 = vld [vmem:[#allocation10 + $0x1c8] sm:$0xff]
    %v394 = vld [vmem:[#allocation10 + $0x1d0] sm:$0xff]
    %v395 = vld [vmem:[#allocation10 + $0x1d8] sm:$0xff]
    %v396 = vld [vmem:[#allocation10 + $0x1e0] sm:$0xff]
    %v397 = vld [vmem:[#allocation10 + $0x1e8] sm:$0xff]
    %v398 = vld [vmem:[#allocation10 + $0x1f0] sm:$0xff]
    %v399 = vld [vmem:[#allocation10 + $0x1f8] sm:$0xff]
    %v400 = vld [vmem:[%s6] sm:$0x3]
    %v402 = vperm.slane %v400, 0
    %v403 = vperm.slane %v400, 1
    %406 = vmatpush.msra.mxu0 %v366
    %407 = vmatpush.msra.mxu0 %v364
    %408 = vmatpush.msra.mxu0 %v362
    %409 = vmatpush.msra.mxu0 %v360
    %410 = vmatpush.msra.mxu0 %v358
    %411 = vmatpush.msra.mxu0 %v356
    %412 = vmatpush.msra.mxu0 %v354
    %413 = vmatpush.msra.mxu0 %v352
    %414 = vmatpush.msra.mxu0 %v350
    %415 = vmatpush.msra.mxu0 %v348
    %416 = vmatpush.msra.mxu0 %v346
    %417 = vmatpush.msra.mxu0 %v344
    %418 = vmatpush.msra.mxu0 %v342
    %419 = vmatpush.msra.mxu0 %v340
    %420 = vmatpush.msra.mxu0 %v338
    %421 = vmatpush.msra.mxu0 %v336
    %422 = vmatmul.f32.gmra.mxu0 %v334
    %v423 = vpop.f32.mrf.mxu0
    %v424 = vadd.f32 %v402, %v423
    %425 = vdwg.mxu0
    %426 = vmatpush.msra.mxu0 %v398
    %427 = vmatpush.msra.mxu0 %v396
    %428 = vmatpush.msra.mxu0 %v394
    %429 = vmatpush.msra.mxu0 %v392
    %430 = vmatpush.msra.mxu0 %v390
    %431 = vmatpush.msra.mxu0 %v388
    %432 = vmatpush.msra.mxu0 %v386
    %433 = vmatpush.msra.mxu0 %v384
    %434 = vmatpush.msra.mxu0 %v382
    %435 = vmatpush.msra.mxu0 %v380
    %436 = vmatpush.msra.mxu0 %v378
    %437 = vmatpush.msra.mxu0 %v376
    %438 = vmatpush.msra.mxu0 %v374
    %439 = vmatpush.msra.mxu0 %v372
    %440 = vmatpush.msra.mxu0 %v370
    %441 = vmatpush.msra.mxu0 %v368
    %442 = vmatmul.f32.gmra.mxu0 %v335
    %v443 = vpop.f32.mrf.mxu0
    %v444 = vadd.f32 %v424, %v443
    %445 = vdwg.mxu0
    %446 = vmatpush.msra.mxu0 %v367
    %447 = vmatpush.msra.mxu0 %v365
    %448 = vmatpush.msra.mxu0 %v363
    %449 = vmatpush.msra.mxu0 %v361
    %450 = vmatpush.msra.mxu0 %v359
    %451 = vmatpush.msra.mxu0 %v357
    %452 = vmatpush.msra.mxu0 %v355
    %453 = vmatpush.msra.mxu0 %v353
    %454 = vmatpush.msra.mxu0 %v351
    %455 = vmatpush.msra.mxu0 %v349
    %456 = vmatpush.msra.mxu0 %v347
    %457 = vmatpush.msra.mxu0 %v345
    %458 = vmatpush.msra.mxu0 %v343
    %459 = vmatpush.msra.mxu0 %v341
    %460 = vmatpush.msra.mxu0 %v339
    %461 = vmatpush.msra.mxu0 %v337
    %462 = vmatmul.f32.gmra.mxu0 %v334
    %v463 = vpop.f32.mrf.mxu0
    %v464 = vadd.f32 %v403, %v463
    %465 = vdwg.mxu0
    %466 = vmatpush.msra.mxu0 %v399
    %467 = vmatpush.msra.mxu0 %v397
    %468 = vmatpush.msra.mxu0 %v395
    %469 = vmatpush.msra.mxu0 %v393
    %470 = vmatpush.msra.mxu0 %v391
    %471 = vmatpush.msra.mxu0 %v389
    %472 = vmatpush.msra.mxu0 %v387
    %473 = vmatpush.msra.mxu0 %v385
    %474 = vmatpush.msra.mxu0 %v383
    %475 = vmatpush.msra.mxu0 %v381
    %476 = vmatpush.msra.mxu0 %v379
    %477 = vmatpush.msra.mxu0 %v377
    %478 = vmatpush.msra.mxu0 %v375
    %479 = vmatpush.msra.mxu0 %v373
    %480 = vmatpush.msra.mxu0 %v371
    %481 = vmatpush.msra.mxu0 %v369
    %482 = vmatmul.f32.gmra.mxu0 %v335
    %v483 = vpop.f32.mrf.mxu0
    %v484 = vadd.f32 %v464, %v483
    %485 = vdwg.mxu0
    %v486 = vld [vmem:[#allocation11] sm:$0xff]
    %v487 = vld [vmem:[#allocation11 + $0x8] sm:$0xff]
    %v488 = vld [vmem:[#allocation11 + $0x10] sm:$0xff]
    %v489 = vld [vmem:[#allocation11 + $0x18] sm:$0xff]
    %v490 = vld [vmem:[#allocation11 + $0x20] sm:$0xff]
    %v491 = vld [vmem:[#allocation11 + $0x28] sm:$0xff]
    %v492 = vld [vmem:[#allocation11 + $0x30] sm:$0xff]
    %v493 = vld [vmem:[#allocation11 + $0x38] sm:$0xff]
    %v494 = vld [vmem:[#allocation11 + $0x40] sm:$0xff]
    %v495 = vld [vmem:[#allocation11 + $0x48] sm:$0xff]
    %v496 = vld [vmem:[#allocation11 + $0x50] sm:$0xff]
    %v497 = vld [vmem:[#allocation11 + $0x58] sm:$0xff]
    %v498 = vld [vmem:[#allocation11 + $0x60] sm:$0xff]
    %v499 = vld [vmem:[#allocation11 + $0x68] sm:$0xff]
    %v500 = vld [vmem:[#allocation11 + $0x70] sm:$0xff]
    %v501 = vld [vmem:[#allocation11 + $0x78] sm:$0xff]
    %v502 = vld [vmem:[#allocation11 + $0x80] sm:$0xff]
    %v503 = vld [vmem:[#allocation11 + $0x88] sm:$0xff]
    %v504 = vld [vmem:[#allocation11 + $0x90] sm:$0xff]
    %v505 = vld [vmem:[#allocation11 + $0x98] sm:$0xff]
    %v506 = vld [vmem:[#allocation11 + $0xa0] sm:$0xff]
    %v507 = vld [vmem:[#allocation11 + $0xa8] sm:$0xff]
    %v508 = vld [vmem:[#allocation11 + $0xb0] sm:$0xff]
    %v509 = vld [vmem:[#allocation11 + $0xb8] sm:$0xff]
    %v510 = vld [vmem:[#allocation11 + $0xc0] sm:$0xff]
    %v511 = vld [vmem:[#allocation11 + $0xc8] sm:$0xff]
    %v512 = vld [vmem:[#allocation11 + $0xd0] sm:$0xff]
    %v513 = vld [vmem:[#allocation11 + $0xd8] sm:$0xff]
    %v514 = vld [vmem:[#allocation11 + $0xe0] sm:$0xff]
    %v515 = vld [vmem:[#allocation11 + $0xe8] sm:$0xff]
    %v516 = vld [vmem:[#allocation11 + $0xf0] sm:$0xff]
    %v517 = vld [vmem:[#allocation11 + $0xf8] sm:$0xff]
    %v518 = vld [vmem:[%s8] sm:$0x1]
    %v520 = vperm.slane %v518, 0
    %522 = vmatpush.msra.mxu0 %v501
    %523 = vmatpush.msra.mxu0 %v500
    %524 = vmatpush.msra.mxu0 %v499
    %525 = vmatpush.msra.mxu0 %v498
    %526 = vmatpush.msra.mxu0 %v497
    %527 = vmatpush.msra.mxu0 %v496
    %528 = vmatpush.msra.mxu0 %v495
    %529 = vmatpush.msra.mxu0 %v494
    %530 = vmatpush.msra.mxu0 %v493
    %531 = vmatpush.msra.mxu0 %v492
    %532 = vmatpush.msra.mxu0 %v491
    %533 = vmatpush.msra.mxu0 %v490
    %534 = vmatpush.msra.mxu0 %v489
    %535 = vmatpush.msra.mxu0 %v488
    %536 = vmatpush.msra.mxu0 %v487
    %537 = vmatpush.msra.mxu0 %v486
    %538 = vmatmul.f32.gmra.mxu0 %v444
    %v539 = vpop.f32.mrf.mxu0
    %v540 = vadd.f32 %v520, %v539
    %541 = vdwg.mxu0
    %542 = vmatpush.msra.mxu0 %v517
    %543 = vmatpush.msra.mxu0 %v516
    %544 = vmatpush.msra.mxu0 %v515
    %545 = vmatpush.msra.mxu0 %v514
    %546 = vmatpush.msra.mxu0 %v513
    %547 = vmatpush.msra.mxu0 %v512
    %548 = vmatpush.msra.mxu0 %v511
    %549 = vmatpush.msra.mxu0 %v510
    %550 = vmatpush.msra.mxu0 %v509
    %551 = vmatpush.msra.mxu0 %v508
    %552 = vmatpush.msra.mxu0 %v507
    %553 = vmatpush.msra.mxu0 %v506
    %554 = vmatpush.msra.mxu0 %v505
    %555 = vmatpush.msra.mxu0 %v504
    %556 = vmatpush.msra.mxu0 %v503
    %557 = vmatpush.msra.mxu0 %v502
    %558 = vmatmul.f32.gmra.mxu0 %v484
    %v559 = vpop.f32.mrf.mxu0
    %v560 = vadd.f32 %v540, %v559
    %561 = vdwg.mxu0
    %562 = vst [vmem:[#allocation13] sm:$0xff] %v560
    // Predicated region
    $region62: #{tpu_custom_call.1} parent=1 // pred_check
      _
    $region63: #{tpu_custom_call.1} parent=1 // pred_check_branch
      %564 = sbr.rel (0) target = $region65
    $region64: #{tpu_custom_call.1} parent=1 // pred_region
      %566 = vsyncadd [#allocation4], 0
      %s568 = sshll.u32 [#allocation13], 4
      %s569 = int_to_ptr.vmem [resolvable:$true] %s568
      %s570 = sshll.u32 %s9, 4
      %s571 = int_to_ptr.hbm [resolvable:$true] %s570
      %573 = dma.vmem_to_hbm [thread:$0]  %s569, 128, %s571, [#allocation4]
    $region65: #{tpu_custom_call.1} parent=1 // pred_fallthru
      _
    // Predicated region
    $region66: #{tpu_custom_call.1} parent=1 // pred_check
      _
    $region67: #{tpu_custom_call.1} parent=1 // pred_check_branch
      %575 = sbr.rel (0) target = $region69
    $region68: #{tpu_custom_call.1} parent=1 // pred_region
      %577 = dma.done [#allocation4], 128
    $region69: #{tpu_custom_call.1} parent=1 // pred_fallthru
      _
    %578 = vsyncpa [#allocation3], 1
    %579 = vsyncpa [#allocation6], 1
    %580 = vsyncpa [#allocation9], 1
    %581 = vsyncpa [#allocation12], 1
    %582 = vsyncpa [#allocation4], 1

</llo_original>
